<compile_context>
chip_gen: v7x
topology: tpu7x:2x2x1
jax: 0.10.0
libtpu: 0.0.40
codegen_flags: <defaults>
</compile_context>

<pallas_src>
import functools

import jax
import jax.numpy as jnp
from jax import lax
from jax.experimental import pallas as pl
from jax.experimental.pallas import tpu as pltpu


def _round_up(v, m):
    return (v + m - 1) // m * m


def _vmem_capacity_bytes():
    try:
        return int(pltpu.get_tpu_info().vmem_capacity_bytes)
    except Exception:
        return 128 * 1024 * 1024


def _widen(ht_i8):
    # int8 (0/1) -> bf16 MXU operand. Two-step cast keeps lowering on the
    # well-supported sitofp(i8->f32) + truncf(f32->bf16) path.
    return ht_i8.astype(jnp.float32).astype(jnp.bfloat16)


def _phase01_kernel(ht_ref, z_ref, w1_ref, b1_ref, dinv_ref, binv_ref,
                    e2_ref, acc1_ref, acc2_ref, e1_ref, *, defer_w1):
    """Grid (2, T): phase 0 gathers layer-1 hyperedge features; phase 1 scatters
    them back to nodes, applies (deferred) W1 + bias + ReLU, and gathers the
    layer-2 hyperedge features into acc2."""
    phase = pl.program_id(0)
    tile = pl.program_id(1)
    last = pl.num_programs(1) - 1

    @pl.when(jnp.logical_and(phase == 0, tile == 0))
    def _init():
        acc1_ref[...] = jnp.zeros_like(acc1_ref)
        acc2_ref[...] = jnp.zeros_like(acc2_ref)
        # Never leave the (constant-index) output block uninitialized.
        e2_ref[...] = jnp.zeros_like(e2_ref)

    @pl.when(phase == 0)
    def _gather_layer1():
        ht = _widen(ht_ref[...])                                        # (EP, tm)
        acc1_ref[...] += jnp.dot(ht, z_ref[...],
                                 preferred_element_type=jnp.float32)    # (EP, W0)

    @pl.when(jnp.logical_and(phase == 1, tile == 0))
    def _hoist_e1():
        # binv scale + bf16 pack done once per phase (constant across node tiles).
        e1_ref[...] = (acc1_ref[...] * binv_ref[...]).astype(jnp.bfloat16)

    @pl.when(phase == 1)
    def _scatter1_gather2():
        ht = _widen(ht_ref[...])
        # Node scatter: H_tile @ e1 == contract dim 0 of HT_tile with dim 0 of e1.
        # TODO(synk): inspect the Mosaic dump for an XLU transpose of the large ht
        # operand here; if present, restructure so the transpose lands on e1.
        n1 = lax.dot_general(ht, e1_ref[...],
                             dimension_numbers=(((0,), (0,)), ((), ())),
                             preferred_element_type=jnp.float32)        # (tm, W0)
        g1 = n1 * dinv_ref[...]
        if defer_w1:
            g1 = jnp.dot(g1.astype(jnp.bfloat16), w1_ref[...],
                         preferred_element_type=jnp.float32)            # (tm, dim)
        # Padded node rows evaluate relu(b1) != 0 here; harmless because their
        # HT columns are zero, so they never reach acc2. Keep it that way.
        h1 = jnp.maximum(g1 + b1_ref[...], 0.0)
        # dropout(training=False) == identity.
        acc2_ref[...] += jnp.dot(ht, h1.astype(jnp.bfloat16),
                                 preferred_element_type=jnp.float32)    # (EP, dim)

    @pl.when(jnp.logical_and(phase == 1, tile == last))
    def _emit_e2():
        e2_ref[...] = (acc2_ref[...] * binv_ref[...]).astype(jnp.bfloat16)


def _phase2_kernel(ht_ref, e2_ref, w2_ref, b2_ref, dinv_ref, out_ref):
    """Grid (T,), parallel over node tiles: scatter the layer-2 hyperedge
    features back to nodes, apply the deferred W2 + bias, log_softmax."""
    ht = _widen(ht_ref[...])                                            # (EP, tm)
    n2 = lax.dot_general(ht, e2_ref[...],
                         dimension_numbers=(((0,), (0,)), ((), ())),
                         preferred_element_type=jnp.float32)            # (tm, dim)
    g2 = (n2 * dinv_ref[...]).astype(jnp.bfloat16)
    # Deferred W2 (propagation is linear). Padded class lanes carry a -1e30 bias
    # so they never win the softmax.
    logits = jnp.dot(g2, w2_ref[...],
                     preferred_element_type=jnp.float32) + b2_ref[...]  # (tm, CP)
    m = jnp.max(logits, axis=1, keepdims=True)
    lse = m + jnp.log(jnp.sum(jnp.exp(logits - m), axis=1, keepdims=True))
    out_ref[...] = logits - lse


@functools.partial(jax.jit, static_argnames=("node_tile",))
def hyperconv_forward(H, x, w1, b1, w2, b2, *, node_tile=None):
    N, E = H.shape
    F = x.shape[1]
    dim = w1.shape[1]
    C = w2.shape[1]

    # ---- per-generation sizing (trace-time) ----
    vmem_cap = _vmem_capacity_bytes()
    # ~80 MiB on 128 MiB parts (v5e/v6e), ~40 MiB on v7x's 64 MiB.
    vmem_limit = int(min(100 * 1024 * 1024, vmem_cap * 5 // 8))
    if node_tile is None:
        node_tile = 1024 if vmem_cap >= 96 * 1024 * 1024 else 256
    node_tile = _round_up(node_tile, 128)

    # ---- XLA-side preprocessing (graph-static): degrees, pad, transpose, cast ----
    deg_n = jnp.sum(H, axis=1, keepdims=True)                       # (N, 1)
    deg_e = jnp.sum(H, axis=0)                                      # (E,)
    dinv = jnp.where(deg_n > 0, 1.0 / deg_n, 0.0).astype(jnp.float32)
    binv = jnp.where(deg_e > 0, 1.0 / deg_e, 0.0).astype(jnp.float32)

    CP = 128                                   # lane-dense class padding
    EP = _round_up(E, 32)                      # int8 sublane packing
    tm = min(node_tile, _round_up(N, 128))     # node tile (multiple of 128)
    NP = _round_up(N, tm)
    T = NP // tm

    # Incidence, transposed and compressed to int8 (entries are exactly 0/1).
    HT = jnp.zeros((EP, NP), jnp.int8).at[:E, :N].set(H.T.astype(jnp.int8))

    # Layer 1: stream whichever side of the propagation is narrower.
    defer_w1 = F < dim
    if defer_w1:
        z = jnp.zeros((NP, F), jnp.bfloat16).at[:N, :].set(x.astype(jnp.bfloat16))
        W0 = F
    else:
        xw = x.astype(jnp.bfloat16) @ w1.astype(jnp.bfloat16)
        z = jnp.zeros((NP, dim), jnp.bfloat16).at[:N, :].set(xw.astype(jnp.bfloat16))
        W0 = dim

    w1b = w1.astype(jnp.bfloat16)
    b1f = b1.reshape(1, dim).astype(jnp.float32)
    w2p = jnp.zeros((dim, CP), jnp.bfloat16).at[:, :C].set(w2.astype(jnp.bfloat16))
    b2p = jnp.full((1, CP), -1e30, jnp.float32).at[0, :C].set(
        b2.reshape(-1).astype(jnp.float32))
    dinv_p = jnp.zeros((NP, 1), jnp.float32).at[:N, :].set(dinv)
    binv_p = jnp.zeros((EP, 1), jnp.float32).at[:E, 0].set(binv)

    # ---- call A: phases 0 (gather) and 1 (scatter + W1 + relu + gather) ----
    e2 = pl.pallas_call(
        functools.partial(_phase01_kernel, defer_w1=defer_w1),
        out_shape=jax.ShapeDtypeStruct((EP, dim), jnp.bfloat16),
        grid_spec=pltpu.PrefetchScalarGridSpec(
            num_scalar_prefetch=0,
            grid=(2, T),                                   # (phase, node tile)
            in_specs=[
                pl.BlockSpec((EP, tm), lambda p, i: (0, i)),              # HT (int8)
                # X (or X@W1) tile: only consumed in phase 0; stay on block 0 after.
                pl.BlockSpec((tm, W0), lambda p, i: (jnp.where(p == 0, i, 0), 0)),
                pl.BlockSpec((F, dim), lambda p, i: (0, 0)),              # W1
                pl.BlockSpec((1, dim), lambda p, i: (0, 0)),              # b1
                pl.BlockSpec((tm, 1), lambda p, i: (i, 0)),               # dinv tile
                pl.BlockSpec((EP, 1), lambda p, i: (0, 0)),               # binv
            ],
            # Hyperedge features (binv-scaled, bf16); written on the final step,
            # constant block index -> one writeback at the end of the grid.
            out_specs=pl.BlockSpec((EP, dim), lambda p, i: (0, 0)),
            scratch_shapes=[
                pltpu.VMEM((EP, W0), jnp.float32),    # acc1: layer-1 edge features
                pltpu.VMEM((EP, dim), jnp.float32),   # acc2: layer-2 edge features
                pltpu.VMEM((EP, W0), jnp.bfloat16),   # e1: hoisted binv*acc1 (bf16)
            ],
        ),
        compiler_params=pltpu.CompilerParams(
            # Node-tile axis carries a cross-tile reduction -> both arbitrary.
            dimension_semantics=("arbitrary", "arbitrary"),
            vmem_limit_bytes=vmem_limit,
        ),
    )(HT, z, w1b, b1f, dinv_p, binv_p)

    # ---- call B: phase 2 (scatter + deferred W2 + log_softmax), parallel ----
    out = pl.pallas_call(
        _phase2_kernel,
        out_shape=jax.ShapeDtypeStruct((NP, CP), jnp.float32),
        grid_spec=pltpu.PrefetchScalarGridSpec(
            num_scalar_prefetch=0,
            grid=(T,),
            in_specs=[
                pl.BlockSpec((EP, tm), lambda i: (0, i)),     # HT tile (int8)
                pl.BlockSpec((EP, dim), lambda i: (0, 0)),    # e2 (edge features)
                pl.BlockSpec((dim, CP), lambda i: (0, 0)),    # W2 (class-padded)
                pl.BlockSpec((1, CP), lambda i: (0, 0)),      # b2 (class-padded)
                pl.BlockSpec((tm, 1), lambda i: (i, 0)),      # dinv tile
            ],
            out_specs=pl.BlockSpec((tm, CP), lambda i: (i, 0)),
        ),
        compiler_params=pltpu.CompilerParams(
            dimension_semantics=("parallel",),     # both TCs on v7x
            vmem_limit_bytes=vmem_limit,
        ),
    )(HT, e2, w2p, b2p, dinv_p)

    return out[:N, :C]


def _glorot(key, fan_in, fan_out):
    limit = jnp.sqrt(6.0 / (fan_in + fan_out))
    return jax.random.uniform(key, (fan_in, fan_out), jnp.float32, -limit, limit)


def _reference(H, x, w1, b1, w2, b2):
    deg_n = H.sum(1, keepdims=True)
    deg_e = H.sum(0, keepdims=True)
    dinv = jnp.where(deg_n > 0, 1.0 / deg_n, 0.0)
    binv = jnp.where(deg_e > 0, 1.0 / deg_e, 0.0)

    def prop(f):
        return dinv * (H @ (binv.T * (H.T @ f)))

    h1 = jax.nn.relu(prop(x @ w1) + b1)
    h2 = prop(h1 @ w2) + b2
    return jax.nn.log_softmax(h2, axis=1)


if __name__ == "__main__":
    # Small synthetic hypergraph (classification path:
    # is_regression=False, is_edge_pred=False).
    num_nodes = 64
    num_node_features = 16
    num_hyperedges = 24
    dim = 32
    num_classes = 8

    key = jax.random.PRNGKey(0)
    k_x, k_w1, k_w2 = jax.random.split(key, 3)

    x = jax.random.normal(k_x, (num_nodes, num_node_features), jnp.float32)

    # Deterministic hyperedge_index: each node joins two hyperedges.
    nodes = jnp.arange(num_nodes)
    src = jnp.concatenate([nodes, nodes])
    dst = jnp.concatenate([nodes % num_hyperedges,
                           (3 * nodes + 1) % num_hyperedges])
    # Dense incidence matrix (glue; the scatter stays in plain JAX).
    H = jnp.zeros((num_nodes, num_hyperedges), jnp.float32).at[src, dst].set(1.0)

    # Parameters (glorot weights, zero biases — PyG defaults).
    w1 = _glorot(k_w1, num_node_features, dim)
    b1 = jnp.zeros((1, dim), jnp.float32)
    w2 = _glorot(k_w2, dim, num_classes)
    b2 = jnp.zeros((1, num_classes), jnp.float32)

    out = hyperconv_forward(H, x, w1, b1, w2, b2)
    out = jax.block_until_ready(out)

    ref = _reference(H, x, w1, b1, w2, b2)
    assert out.shape == (num_nodes, num_classes)
    # bf16 MXU operands with f32 accumulation -> ~1e-2-level differences vs f32 ref.
    assert jnp.allclose(out, ref, atol=5e-2, rtol=5e-2)

    print("KERNEL_OK")
</pallas_src>

<mosaic_0001>
module attributes {stable_mosaic.version = 11 : i64} {
  func.func @_phase01_kernel(%arg0: i32, %arg1: i32, %arg2: memref<32x128xi8, #tpu.memory_space<vmem>>, %arg3: memref<128x16xbf16, #tpu.memory_space<vmem>>, %arg4: memref<16x32xbf16, #tpu.memory_space<vmem>>, %arg5: memref<1x32xf32, #tpu.memory_space<vmem>>, %arg6: memref<128x1xf32, #tpu.memory_space<vmem>>, %arg7: memref<32x1xf32, #tpu.memory_space<vmem>>, %arg8: memref<32x32xbf16, #tpu.memory_space<vmem>>, %arg9: memref<32x16xf32, #tpu.memory_space<vmem>>, %arg10: memref<32x32xf32, #tpu.memory_space<vmem>>, %arg11: memref<32x16xbf16, #tpu.memory_space<vmem>>) attributes {dimension_semantics = [#tpu.dimension_semantics<arbitrary>, #tpu.dimension_semantics<arbitrary>], iteration_bounds = array<i64: 2, 1>, scalar_prefetch = 0 : i64, scratch_operands = 3 : i64, tpu.core_type = #tpu.core_type<tc>, window_params = [{transform_indices = @transform_0, window_bounds = array<i64: 32, 128>}, {transform_indices = @transform_1, window_bounds = array<i64: 128, 16>}, {pipeline_mode = #tpu.pipeline_mode<synchronous>, transform_indices = @transform_2, window_bounds = array<i64: 16, 32>}, {pipeline_mode = #tpu.pipeline_mode<synchronous>, transform_indices = @transform_3, window_bounds = array<i64: 1, 32>}, {transform_indices = @transform_4, window_bounds = array<i64: 128, 1>}, {pipeline_mode = #tpu.pipeline_mode<synchronous>, transform_indices = @transform_5, window_bounds = array<i64: 32, 1>}, {pipeline_mode = #tpu.pipeline_mode<synchronous>, transform_indices = @transform_6, window_bounds = array<i64: 32, 32>}]} {
    %c0_i32 = arith.constant 0 : i32
    %0 = arith.cmpi eq, %arg0, %c0_i32 : i32
    %c0_i32_0 = arith.constant 0 : i32
    %1 = arith.cmpi eq, %arg1, %c0_i32_0 : i32
    %2 = arith.andi %0, %1 : i1
    %3 = arith.extui %2 : i1 to i32
    %c0_i32_1 = arith.constant 0 : i32
    %4 = arith.cmpi ne, %3, %c0_i32_1 : i32
    scf.if %4 {
      %cst = arith.constant 0.000000e+00 : f32
      %21 = vector.broadcast %cst : f32 to vector<32x16xf32>
      %c0 = arith.constant 0 : index
      %c0_11 = arith.constant 0 : index
      %22 = vector.load %arg9[%c0, %c0_11] : memref<32x16xf32, #tpu.memory_space<vmem>>, vector<32x16xf32>
      tpu.vector_store %arg9[%c0, %c0_11], %21 {strides = array<i32>} : memref<32x16xf32, #tpu.memory_space<vmem>>, vector<32x16xf32>,
      %cst_12 = arith.constant 0.000000e+00 : f32
      %23 = vector.broadcast %cst_12 : f32 to vector<32x32xf32>
      %c0_13 = arith.constant 0 : index
      %c0_14 = arith.constant 0 : index
      %24 = vector.load %arg10[%c0_13, %c0_14] : memref<32x32xf32, #tpu.memory_space<vmem>>, vector<32x32xf32>
      tpu.vector_store %arg10[%c0_13, %c0_14], %23 {strides = array<i32>} : memref<32x32xf32, #tpu.memory_space<vmem>>, vector<32x32xf32>,
      %cst_15 = arith.constant 0.000000e+00 : bf16
      %25 = vector.broadcast %cst_15 : bf16 to vector<32x32xbf16>
      %c0_16 = arith.constant 0 : index
      %c0_17 = arith.constant 0 : index
      %26 = vector.load %arg8[%c0_16, %c0_17] : memref<32x32xbf16, #tpu.memory_space<vmem>>, vector<32x32xbf16>
      tpu.vector_store %arg8[%c0_16, %c0_17], %25 {strides = array<i32>} : memref<32x32xbf16, #tpu.memory_space<vmem>>, vector<32x32xbf16>,
    } else {
    }
    %c0_i32_2 = arith.constant 0 : i32
    %5 = arith.cmpi eq, %arg0, %c0_i32_2 : i32
    %6 = arith.extui %5 : i1 to i32
    %c0_i32_3 = arith.constant 0 : i32
    %7 = arith.cmpi ne, %6, %c0_i32_3 : i32
    scf.if %7 {
      %c0 = arith.constant 0 : index
      %c0_11 = arith.constant 0 : index
      %21 = vector.load %arg2[%c0, %c0_11] : memref<32x128xi8, #tpu.memory_space<vmem>>, vector<32x128xi8>
      %22 = arith.sitofp %21 : vector<32x128xi8> to vector<32x128xf32>
      %23 = arith.truncf %22 : vector<32x128xf32> to vector<32x128xbf16>
      %c0_12 = arith.constant 0 : index
      %c0_13 = arith.constant 0 : index
      %24 = vector.load %arg9[%c0_12, %c0_13] : memref<32x16xf32, #tpu.memory_space<vmem>>, vector<32x16xf32>
      %c0_14 = arith.constant 0 : index
      %c0_15 = arith.constant 0 : index
      %25 = vector.load %arg3[%c0_14, %c0_15] : memref<128x16xbf16, #tpu.memory_space<vmem>>, vector<128x16xbf16>
      %cst = arith.constant dense<0.000000e+00> : vector<32x16xf32>
      %26 = tpu.matmul %23, %25, %cst {dimension_numbers = #tpu.dot_dimension_numbers<[1], [0], [0], [1], [0, 0, 1, 1], [], []>} : vector<32x128xbf16>, vector<128x16xbf16>, vector<32x16xf32> -> vector<32x16xf32>
      %27 = arith.addf %24, %26 : vector<32x16xf32>
      %c0_16 = arith.constant 0 : index
      %c0_17 = arith.constant 0 : index
      %28 = vector.load %arg9[%c0_16, %c0_17] : memref<32x16xf32, #tpu.memory_space<vmem>>, vector<32x16xf32>
      tpu.vector_store %arg9[%c0_16, %c0_17], %27 {strides = array<i32>} : memref<32x16xf32, #tpu.memory_space<vmem>>, vector<32x16xf32>,
    } else {
    }
    %c1_i32 = arith.constant 1 : i32
    %8 = arith.cmpi eq, %arg0, %c1_i32 : i32
    %c0_i32_4 = arith.constant 0 : i32
    %9 = arith.cmpi eq, %arg1, %c0_i32_4 : i32
    %10 = arith.andi %8, %9 : i1
    %11 = arith.extui %10 : i1 to i32
    %c0_i32_5 = arith.constant 0 : i32
    %12 = arith.cmpi ne, %11, %c0_i32_5 : i32
    scf.if %12 {
      %c0 = arith.constant 0 : index
      %c0_11 = arith.constant 0 : index
      %21 = vector.load %arg9[%c0, %c0_11] : memref<32x16xf32, #tpu.memory_space<vmem>>, vector<32x16xf32>
      %c0_12 = arith.constant 0 : index
      %c0_13 = arith.constant 0 : index
      %22 = vector.load %arg7[%c0_12, %c0_13] : memref<32x1xf32, #tpu.memory_space<vmem>>, vector<32x1xf32>
      %23 = vector.broadcast %22 : vector<32x1xf32> to vector<32x16xf32>
      %24 = arith.mulf %21, %23 : vector<32x16xf32>
      %25 = arith.truncf %24 : vector<32x16xf32> to vector<32x16xbf16>
      %c0_14 = arith.constant 0 : index
      %c0_15 = arith.constant 0 : index
      %26 = vector.load %arg11[%c0_14, %c0_15] : memref<32x16xbf16, #tpu.memory_space<vmem>>, vector<32x16xbf16>
      tpu.vector_store %arg11[%c0_14, %c0_15], %25 {strides = array<i32>} : memref<32x16xbf16, #tpu.memory_space<vmem>>, vector<32x16xbf16>,
    } else {
    }
    %c1_i32_6 = arith.constant 1 : i32
    %13 = arith.cmpi eq, %arg0, %c1_i32_6 : i32
    %14 = arith.extui %13 : i1 to i32
    %c0_i32_7 = arith.constant 0 : i32
    %15 = arith.cmpi ne, %14, %c0_i32_7 : i32
    scf.if %15 {
      %c0 = arith.constant 0 : index
      %c0_11 = arith.constant 0 : index
      %21 = vector.load %arg2[%c0, %c0_11] : memref<32x128xi8, #tpu.memory_space<vmem>>, vector<32x128xi8>
      %22 = arith.sitofp %21 : vector<32x128xi8> to vector<32x128xf32>
      %23 = arith.truncf %22 : vector<32x128xf32> to vector<32x128xbf16>
      %c0_12 = arith.constant 0 : index
      %c0_13 = arith.constant 0 : index
      %24 = vector.load %arg11[%c0_12, %c0_13] : memref<32x16xbf16, #tpu.memory_space<vmem>>, vector<32x16xbf16>
      %cst = arith.constant dense<0.000000e+00> : vector<128x16xf32>
      %25 = tpu.matmul %23, %24, %cst {dimension_numbers = #tpu.dot_dimension_numbers<[0], [0], [1], [1], [0, 1, 1, 1], [], []>} : vector<32x128xbf16>, vector<32x16xbf16>, vector<128x16xf32> -> vector<128x16xf32>
      %c0_14 = arith.constant 0 : index
      %c0_15 = arith.constant 0 : index
      %26 = vector.load %arg6[%c0_14, %c0_15] : memref<128x1xf32, #tpu.memory_space<vmem>>, vector<128x1xf32>
      %27 = vector.broadcast %26 : vector<128x1xf32> to vector<128x16xf32>
      %28 = arith.mulf %25, %27 : vector<128x16xf32>
      %29 = arith.truncf %28 : vector<128x16xf32> to vector<128x16xbf16>
      %c0_16 = arith.constant 0 : index
      %c0_17 = arith.constant 0 : index
      %30 = vector.load %arg4[%c0_16, %c0_17] : memref<16x32xbf16, #tpu.memory_space<vmem>>, vector<16x32xbf16>
      %cst_18 = arith.constant dense<0.000000e+00> : vector<128x32xf32>
      %31 = tpu.matmul %29, %30, %cst_18 {dimension_numbers = #tpu.dot_dimension_numbers<[1], [0], [0], [1], [0, 0, 1, 1], [], []>} : vector<128x16xbf16>, vector<16x32xbf16>, vector<128x32xf32> -> vector<128x32xf32>
      %c0_19 = arith.constant 0 : index
      %c0_20 = arith.constant 0 : index
      %32 = vector.load %arg5[%c0_19, %c0_20] : memref<1x32xf32, #tpu.memory_space<vmem>>, vector<1x32xf32>
      %33 = vector.broadcast %32 : vector<1x32xf32> to vector<128x32xf32>
      %34 = arith.addf %31, %33 : vector<128x32xf32>
      %cst_21 = arith.constant 0.000000e+00 : f32
      %35 = vector.broadcast %cst_21 : f32 to vector<128x32xf32>
      %36 = arith.maximumf %34, %35 : vector<128x32xf32>
      %c0_22 = arith.constant 0 : index
      %c0_23 = arith.constant 0 : index
      %37 = vector.load %arg10[%c0_22, %c0_23] : memref<32x32xf32, #tpu.memory_space<vmem>>, vector<32x32xf32>
      %38 = arith.truncf %36 : vector<128x32xf32> to vector<128x32xbf16>
      %cst_24 = arith.constant dense<0.000000e+00> : vector<32x32xf32>
      %39 = tpu.matmul %23, %38, %cst_24 {dimension_numbers = #tpu.dot_dimension_numbers<[1], [0], [0], [1], [0, 0, 1, 1], [], []>} : vector<32x128xbf16>, vector<128x32xbf16>, vector<32x32xf32> -> vector<32x32xf32>
      %40 = arith.addf %37, %39 : vector<32x32xf32>
      %c0_25 = arith.constant 0 : index
      %c0_26 = arith.constant 0 : index
      %41 = vector.load %arg10[%c0_25, %c0_26] : memref<32x32xf32, #tpu.memory_space<vmem>>, vector<32x32xf32>
      tpu.vector_store %arg10[%c0_25, %c0_26], %40 {strides = array<i32>} : memref<32x32xf32, #tpu.memory_space<vmem>>, vector<32x32xf32>,
    } else {
    }
    %c1_i32_8 = arith.constant 1 : i32
    %16 = arith.cmpi eq, %arg0, %c1_i32_8 : i32
    %c0_i32_9 = arith.constant 0 : i32
    %17 = arith.cmpi eq, %arg1, %c0_i32_9 : i32
    %18 = arith.andi %16, %17 : i1
    %19 = arith.extui %18 : i1 to i32
    %c0_i32_10 = arith.constant 0 : i32
    %20 = arith.cmpi ne, %19, %c0_i32_10 : i32
    scf.if %20 {
      %c0 = arith.constant 0 : index
      %c0_11 = arith.constant 0 : index
      %21 = vector.load %arg10[%c0, %c0_11] : memref<32x32xf32, #tpu.memory_space<vmem>>, vector<32x32xf32>
      %c0_12 = arith.constant 0 : index
      %c0_13 = arith.constant 0 : index
      %22 = vector.load %arg7[%c0_12, %c0_13] : memref<32x1xf32, #tpu.memory_space<vmem>>, vector<32x1xf32>
      %23 = vector.broadcast %22 : vector<32x1xf32> to vector<32x32xf32>
      %24 = arith.mulf %21, %23 : vector<32x32xf32>
      %25 = arith.truncf %24 : vector<32x32xf32> to vector<32x32xbf16>
      %c0_14 = arith.constant 0 : index
      %c0_15 = arith.constant 0 : index
      %26 = vector.load %arg8[%c0_14, %c0_15] : memref<32x32xbf16, #tpu.memory_space<vmem>>, vector<32x32xbf16>
      tpu.vector_store %arg8[%c0_14, %c0_15], %25 {strides = array<i32>} : memref<32x32xbf16, #tpu.memory_space<vmem>>, vector<32x32xbf16>,
    } else {
    }
    return
  }
  func.func @transform_0(%arg0: i32, %arg1: i32) -> (i32, i32) {
    %c0_i32 = arith.constant 0 : i32
    %c0_i32_0 = arith.constant 0 : i32
    return %c0_i32, %arg1 : i32, i32
  }
  func.func @transform_1(%arg0: i32, %arg1: i32) -> (i32, i32) {
    %c0_i32 = arith.constant 0 : i32
    %0 = arith.cmpi eq, %arg0, %c0_i32 : i32
    %c0_i32_0 = arith.constant 0 : i32
    %1 = arith.select %0, %arg1, %c0_i32_0 : i32
    %c0_i32_1 = arith.constant 0 : i32
    %c0_i32_2 = arith.constant 0 : i32
    return %1, %c0_i32_1 : i32, i32
  }
  func.func @transform_2(%arg0: i32, %arg1: i32) -> (i32, i32) {
    %c0_i32 = arith.constant 0 : i32
    %c0_i32_0 = arith.constant 0 : i32
    %c0_i32_1 = arith.constant 0 : i32
    return %c0_i32, %c0_i32_0 : i32, i32
  }
  func.func @transform_3(%arg0: i32, %arg1: i32) -> (i32, i32) {
    %c0_i32 = arith.constant 0 : i32
    %c0_i32_0 = arith.constant 0 : i32
    %c0_i32_1 = arith.constant 0 : i32
    return %c0_i32, %c0_i32_0 : i32, i32
  }
  func.func @transform_4(%arg0: i32, %arg1: i32) -> (i32, i32) {
    %c0_i32 = arith.constant 0 : i32
    %c0_i32_0 = arith.constant 0 : i32
    return %arg1, %c0_i32 : i32, i32
  }
  func.func @transform_5(%arg0: i32, %arg1: i32) -> (i32, i32) {
    %c0_i32 = arith.constant 0 : i32
    %c0_i32_0 = arith.constant 0 : i32
    %c0_i32_1 = arith.constant 0 : i32
    return %c0_i32, %c0_i32_0 : i32, i32
  }
  func.func @transform_6(%arg0: i32, %arg1: i32) -> (i32, i32) {
    %c0_i32 = arith.constant 0 : i32
    %c0_i32_0 = arith.constant 0 : i32
    %c0_i32_1 = arith.constant 0 : i32
    return %c0_i32, %c0_i32_0 : i32, i32
  }
}

module attributes {stable_mosaic.version = 11 : i64} {
  func.func @_phase2_kernel(%arg0: i32, %arg1: memref<32x128xi8, #tpu.memory_space<vmem>>, %arg2: memref<32x32xbf16, #tpu.memory_space<vmem>>, %arg3: memref<32x128xbf16, #tpu.memory_space<vmem>>, %arg4: memref<1x128xf32, #tpu.memory_space<vmem>>, %arg5: memref<128x1xf32, #tpu.memory_space<vmem>>, %arg6: memref<128x128xf32, #tpu.memory_space<vmem>>) attributes {dimension_semantics = [#tpu.dimension_semantics<parallel>], iteration_bounds = array<i64: 1>, scalar_prefetch = 0 : i64, scratch_operands = 0 : i64, tpu.core_type = #tpu.core_type<tc>, window_params = [{transform_indices = @transform_0, window_bounds = array<i64: 32, 128>}, {pipeline_mode = #tpu.pipeline_mode<synchronous>, transform_indices = @transform_1, window_bounds = array<i64: 32, 32>}, {pipeline_mode = #tpu.pipeline_mode<synchronous>, transform_indices = @transform_2, window_bounds = array<i64: 32, 128>}, {pipeline_mode = #tpu.pipeline_mode<synchronous>, transform_indices = @transform_3, window_bounds = array<i64: 1, 128>}, {transform_indices = @transform_4, window_bounds = array<i64: 128, 1>}, {transform_indices = @transform_5, window_bounds = array<i64: 128, 128>}]} {
    %c0 = arith.constant 0 : index
    %c0_0 = arith.constant 0 : index
    %0 = vector.load %arg1[%c0, %c0_0] : memref<32x128xi8, #tpu.memory_space<vmem>>, vector<32x128xi8>
    %1 = arith.sitofp %0 : vector<32x128xi8> to vector<32x128xf32>
    %2 = arith.truncf %1 : vector<32x128xf32> to vector<32x128xbf16>
    %c0_1 = arith.constant 0 : index
    %c0_2 = arith.constant 0 : index
    %3 = vector.load %arg2[%c0_1, %c0_2] : memref<32x32xbf16, #tpu.memory_space<vmem>>, vector<32x32xbf16>
    %cst = arith.constant dense<0.000000e+00> : vector<128x32xf32>
    %4 = tpu.matmul %2, %3, %cst {dimension_numbers = #tpu.dot_dimension_numbers<[0], [0], [1], [1], [0, 1, 1, 1], [], []>} : vector<32x128xbf16>, vector<32x32xbf16>, vector<128x32xf32> -> vector<128x32xf32>
    %c0_3 = arith.constant 0 : index
    %c0_4 = arith.constant 0 : index
    %5 = vector.load %arg5[%c0_3, %c0_4] : memref<128x1xf32, #tpu.memory_space<vmem>>, vector<128x1xf32>
    %6 = vector.broadcast %5 : vector<128x1xf32> to vector<128x32xf32>
    %7 = arith.mulf %4, %6 : vector<128x32xf32>
    %8 = arith.truncf %7 : vector<128x32xf32> to vector<128x32xbf16>
    %c0_5 = arith.constant 0 : index
    %c0_6 = arith.constant 0 : index
    %9 = vector.load %arg3[%c0_5, %c0_6] : memref<32x128xbf16, #tpu.memory_space<vmem>>, vector<32x128xbf16>
    %cst_7 = arith.constant dense<0.000000e+00> : vector<128x128xf32>
    %10 = tpu.matmul %8, %9, %cst_7 {dimension_numbers = #tpu.dot_dimension_numbers<[1], [0], [0], [1], [0, 0, 1, 1], [], []>} : vector<128x32xbf16>, vector<32x128xbf16>, vector<128x128xf32> -> vector<128x128xf32>
    %c0_8 = arith.constant 0 : index
    %c0_9 = arith.constant 0 : index
    %11 = vector.load %arg4[%c0_8, %c0_9] : memref<1x128xf32, #tpu.memory_space<vmem>>, vector<1x128xf32>
    %12 = vector.broadcast %11 : vector<1x128xf32> to vector<128x128xf32>
    %13 = arith.addf %10, %12 : vector<128x128xf32>
    %cst_10 = arith.constant dense<0xFF800000> : vector<128xf32>
    %14 = vector.multi_reduction <maximumf>, %13, %cst_10 [1] : vector<128x128xf32> to vector<128xf32>
    %15 = vector.shape_cast %14 : vector<128xf32> to vector<128x1xf32>
    %16 = vector.broadcast %15 : vector<128x1xf32> to vector<128x128xf32>
    %17 = arith.subf %13, %16 : vector<128x128xf32>
    %18 = math.exp %17 : vector<128x128xf32>
    %cst_11 = arith.constant dense<0.000000e+00> : vector<128xf32>
    %19 = vector.multi_reduction <add>, %18, %cst_11 [1] : vector<128x128xf32> to vector<128xf32>
    %20 = vector.shape_cast %19 : vector<128xf32> to vector<128x1xf32>
    %21 = math.log %20 : vector<128x1xf32>
    %22 = arith.addf %15, %21 : vector<128x1xf32>
    %23 = vector.broadcast %22 : vector<128x1xf32> to vector<128x128xf32>
    %24 = arith.subf %13, %23 : vector<128x128xf32>
    %c0_12 = arith.constant 0 : index
    %c0_13 = arith.constant 0 : index
    %25 = vector.load %arg6[%c0_12, %c0_13] : memref<128x128xf32, #tpu.memory_space<vmem>>, vector<128x128xf32>
    tpu.vector_store %arg6[%c0_12, %c0_13], %24 {strides = array<i32>} : memref<128x128xf32, #tpu.memory_space<vmem>>, vector<128x128xf32>,
    return
  }
  func.func @transform_0(%arg0: i32) -> (i32, i32) {
    %c0_i32 = arith.constant 0 : i32
    %c0_i32_0 = arith.constant 0 : i32
    return %c0_i32, %arg0 : i32, i32
  }
  func.func @transform_1(%arg0: i32) -> (i32, i32) {
    %c0_i32 = arith.constant 0 : i32
    %c0_i32_0 = arith.constant 0 : i32
    %c0_i32_1 = arith.constant 0 : i32
    return %c0_i32, %c0_i32_0 : i32, i32
  }
  func.func @transform_2(%arg0: i32) -> (i32, i32) {
    %c0_i32 = arith.constant 0 : i32
    %c0_i32_0 = arith.constant 0 : i32
    %c0_i32_1 = arith.constant 0 : i32
    return %c0_i32, %c0_i32_0 : i32, i32
  }
  func.func @transform_3(%arg0: i32) -> (i32, i32) {
    %c0_i32 = arith.constant 0 : i32
    %c0_i32_0 = arith.constant 0 : i32
    %c0_i32_1 = arith.constant 0 : i32
    return %c0_i32, %c0_i32_0 : i32, i32
  }
  func.func @transform_4(%arg0: i32) -> (i32, i32) {
    %c0_i32 = arith.constant 0 : i32
    %c0_i32_0 = arith.constant 0 : i32
    return %arg0, %c0_i32 : i32, i32
  }
  func.func @transform_5(%arg0: i32) -> (i32, i32) {
    %c0_i32 = arith.constant 0 : i32
    %c0_i32_0 = arith.constant 0 : i32
    return %arg0, %c0_i32 : i32, i32
  }
}

</mosaic_0001>

<llo_original>
// kernel: hyperconv_forward.3
$region0: #{hyperconv_forward.3}
  #allocation0 [shape = 'u32[]', space=smem, size = 0x4, offset = 0x4, fixed_abs, tag = 'smem constant byte address 0x4 - core index']
  #allocation1 [shape = 'u32[144,128]{1,0:T(1,128)}', space=vmem, size = 0x12000, scoped, tag = 'internal scratch']
  %s0 = inlined_call_operand.hbm [shape: s8[32,128], index: 0, kind: input, shape index: {}]
  %s1 = inlined_call_operand.hbm [shape: bf16[32,32], index: 1, kind: input, shape index: {}]
  %s2 = inlined_call_operand.hbm [shape: bf16[32,128], index: 2, kind: input, shape index: {}]
  %s3 = inlined_call_operand.hbm [shape: f32[1,128], index: 3, kind: input, shape index: {}]
  %s4 = inlined_call_operand.hbm [shape: f32[128,1], index: 4, kind: input, shape index: {}]
  %s5 = inlined_call_operand.hbm [shape: f32[128,128], index: 5, kind: output, shape index: {}]
  %s6 = sld [smem:[#allocation0]]
  $region50: #{hyperconv_forward.3} parent=0
    _
  %s8 = ssub.s32 1, %s6
  %s9 = scalar_select 0, %s8, %s6
  $region1: #{hyperconv_forward.3} parent=0
    #allocation2 [shape = 'u8[4096]{0}', space=vmem, size = 0x1000, scoped, tag = 'input window, operand 0, single buffered']
    #allocation3 [shape = 's32[1]{0}', space=sflag, size = 0x4, scoped, tag = 'scoped memory for hyperconv_forward.3']
    #allocation4 [shape = 's32[1]{0}', space=sflag, size = 0x4, scoped, tag = 'scoped memory for hyperconv_forward.3']
    #allocation5 [shape = 'u8[8192]{0}', space=vmem, size = 0x2000, scoped, tag = 'input window, operand 1, single buffered']
    #allocation6 [shape = 's32[1]{0}', space=sflag, size = 0x4, scoped, tag = 'scoped memory for hyperconv_forward.3']
    #allocation7 [shape = 'u8[8192]{0}', space=vmem, size = 0x2000, scoped, tag = 'input window, operand 2, single buffered']
    #allocation8 [shape = 'u8[512]{0}', space=vmem, size = 0x400, scoped, tag = 'input window, operand 3, single buffered']
    #allocation9 [shape = 's32[1]{0}', space=sflag, size = 0x4, scoped, tag = 'scoped memory for hyperconv_forward.3']
    #allocation10 [shape = 'u8[65536]{0}', space=vmem, size = 0x10000, scoped, tag = 'input window, operand 4, single buffered']
    #allocation11 [shape = 'u8[65536]{0}', space=vmem, size = 0x10000, scoped, tag = 'output window, operand 0, single buffered']
    %10 = vsyncpa [#allocation3], 0
    %11 = vsyncpa [#allocation6], 0
    %12 = vsyncpa [#allocation9], 0
    %13 = vsyncpa [#allocation4], 0
    // Predicated region
    $region2: #{hyperconv_forward.3} parent=1 // pred_check
      _
    $region3: #{hyperconv_forward.3} parent=1 // pred_check_branch
      %15 = sbr.rel (0) target = $region5
    $region4: #{hyperconv_forward.3} parent=1 // pred_region
      %s17 = ssub.s32 128, 128
      %18 = vsyncadd [#allocation3], %s17
      %s20 = sshll.u32 [#allocation2], 4
      %s21 = int_to_ptr.vmem [resolvable:$true] %s20
      %23 = dma.hbm_to_vmem [thread:$0]  %s0, 128, %s21, [#allocation3]
    $region5: #{hyperconv_forward.3} parent=1 // pred_fallthru
      _
    // Predicated region
    $region6: #{hyperconv_forward.3} parent=1 // pred_check
      _
    $region7: #{hyperconv_forward.3} parent=1 // pred_check_branch
      %25 = sbr.rel (0) target = $region9
    $region8: #{hyperconv_forward.3} parent=1 // pred_region
      %s27 = ssub.s32 256, 256
      %28 = vsyncadd [#allocation6], %s27
      %s29 = sshll.u32 [#allocation5], 4
      %s30 = int_to_ptr.vmem [resolvable:$true] %s29
      %35 = dma.hbm_to_vmem [thread:$0]  %s1, 256, %s30, [#allocation6], 64, 64, 4
    $region9: #{hyperconv_forward.3} parent=1 // pred_fallthru
      _
    // Predicated region
    $region10: #{hyperconv_forward.3} parent=1 // pred_check
      _
    $region11: #{hyperconv_forward.3} parent=1 // pred_check_branch
      %37 = sbr.rel (0) target = $region13
    $region12: #{hyperconv_forward.3} parent=1 // pred_region
      %s39 = ssub.s32 256, 256
      %40 = vsyncadd [#allocation6], %s39
      %s41 = sshll.u32 [#allocation7], 4
      %s42 = int_to_ptr.vmem [resolvable:$true] %s41
      %47 = dma.hbm_to_vmem [thread:$0]  %s2, 256, %s42, [#allocation6], 64, 64, 4
    $region13: #{hyperconv_forward.3} parent=1 // pred_fallthru
      _
    // Predicated region
    $region14: #{hyperconv_forward.3} parent=1 // pred_check
      _
    $region15: #{hyperconv_forward.3} parent=1 // pred_check_branch
      %49 = sbr.rel (0) target = $region17
    $region16: #{hyperconv_forward.3} parent=1 // pred_region
      %s51 = ssub.s32 16, 16
      %52 = vsyncadd [#allocation9], %s51
      %s54 = sshll.u32 [#allocation8], 4
      %s55 = int_to_ptr.vmem [resolvable:$true] %s54
      %57 = dma.hbm_to_vmem [thread:$0]  %s3, 16, %s55, [#allocation9]
    $region17: #{hyperconv_forward.3} parent=1 // pred_fallthru
      _
    // Predicated region
    $region18: #{hyperconv_forward.3} parent=1 // pred_check
      _
    $region19: #{hyperconv_forward.3} parent=1 // pred_check_branch
      %59 = sbr.rel (0) target = $region21
    $region20: #{hyperconv_forward.3} parent=1 // pred_region
      %s61 = ssub.s32 2048, 2048
      %62 = vsyncadd [#allocation9], %s61
      %s63 = sshll.u32 [#allocation10], 4
      %s64 = int_to_ptr.vmem [resolvable:$true] %s63
      %69 = dma.hbm_to_vmem [thread:$0]  %s4, 2048, %s64, [#allocation9], 128, 128, 8
    $region21: #{hyperconv_forward.3} parent=1 // pred_fallthru
      _
    // Predicated region
    $region22: #{hyperconv_forward.3} parent=1 // pred_check
      _
    $region23: #{hyperconv_forward.3} parent=1 // pred_check_branch
      %71 = sbr.rel (0) target = $region25
    $region24: #{hyperconv_forward.3} parent=1 // pred_region
      %72 = dma.done [#allocation3], 128
    $region25: #{hyperconv_forward.3} parent=1 // pred_fallthru
      _
    // Predicated region
    $region26: #{hyperconv_forward.3} parent=1 // pred_check
      _
    $region27: #{hyperconv_forward.3} parent=1 // pred_check_branch
      %74 = sbr.rel (0) target = $region29
    $region28: #{hyperconv_forward.3} parent=1 // pred_region
      %75 = dma.done [#allocation6], 256
    $region29: #{hyperconv_forward.3} parent=1 // pred_fallthru
      _
    // Predicated region
    $region30: #{hyperconv_forward.3} parent=1 // pred_check
      _
    $region31: #{hyperconv_forward.3} parent=1 // pred_check_branch
      %77 = sbr.rel (0) target = $region33
    $region32: #{hyperconv_forward.3} parent=1 // pred_region
      %78 = dma.done [#allocation6], 256
    $region33: #{hyperconv_forward.3} parent=1 // pred_fallthru
      _
    // Predicated region
    $region34: #{hyperconv_forward.3} parent=1 // pred_check
      _
    $region35: #{hyperconv_forward.3} parent=1 // pred_check_branch
      %80 = sbr.rel (0) target = $region37
    $region36: #{hyperconv_forward.3} parent=1 // pred_region
      %81 = dma.done [#allocation9], 16
    $region37: #{hyperconv_forward.3} parent=1 // pred_fallthru
      _
    // Predicated region
    $region38: #{hyperconv_forward.3} parent=1 // pred_check
      _
    $region39: #{hyperconv_forward.3} parent=1 // pred_check_branch
      %83 = sbr.rel (0) target = $region41
    $region40: #{hyperconv_forward.3} parent=1 // pred_region
      %84 = dma.done [#allocation9], 2048
    $region41: #{hyperconv_forward.3} parent=1 // pred_fallthru
      _
    %v86 = vld [vmem:[#allocation2] sm:$0xff]
    %v87 = vunpack.c.l.s8.bf16 %v86
    %v88 = vunpack.c.h.s8.bf16 %v86
    %v89 = vld [vmem:[#allocation5] sm:$0xf]
    %v90 = vld [vmem:[#allocation5 + $0x4] sm:$0xf]
    %v91 = vld [vmem:[#allocation5 + $0x8] sm:$0xf]
    %v92 = vld [vmem:[#allocation5 + $0xc] sm:$0xf]
    %93 = vxpose.xlu0.c.b16.start [1/8] %v87, 128
    %94 = vxpose.xlu0.c.b16.cont [2/8] %v88, 128
    %95 = vxpose.xlu0.c.b16.cont [3/8] 0, 128
    %96 = vxpose.xlu0.c.b16.cont [4/8] 0, 128
    %97 = vxpose.xlu0.c.b16.cont [5/8] 0, 128
    %98 = vxpose.xlu0.c.b16.cont [6/8] 0, 128
    %99 = vxpose.xlu0.c.b16.cont [7/8] 0, 128
    %100 = vxpose.xlu0.c.b16.end [8/8] 0, 128
    %v101 = vpop.trf.xlu0
    %v102 = vpop.trf.xlu0
    %v103 = vpop.trf.xlu0
    %v104 = vpop.trf.xlu0
    %v105 = vpop.trf.xlu0
    %v106 = vpop.trf.xlu0
    %v107 = vpop.trf.xlu0
    %v108 = vpop.trf.xlu0
    %v113 = vunpack.c.l.b16 %v89
    %v114 = vunpack.c.l.b16 %v90
    %v115 = vunpack.c.l.b16 %v91
    %v116 = vunpack.c.l.b16 %v92
    %v117 = vpack.c.b16 %v114, %v113
    %v118 = vpack.c.b16 %v116, %v115
    %vm121 = vcmask 261120
    %v123 = vsel %vm121, %v101, 0
    %v126 = vsel %vm121, %v102, 0
    %v129 = vsel %vm121, %v103, 0
    %v132 = vsel %vm121, %v104, 0
    %v135 = vsel %vm121, %v105, 0
    %v138 = vsel %vm121, %v106, 0
    %v141 = vsel %vm121, %v107, 0
    %v144 = vsel %vm121, %v108, 0
    %146 = vmatprep.subr.bf16.mxu0 0
    %147 = vmatpush1.bf16.msra.mxu0 %v117
    %148 = vmatprep.subr.bf16.mxu0 0
    %149 = vmatpush1.bf16.msra.mxu0 %v118
    %150 = vmatprep.subr.bf16.mxu0 0
    %151 = vmatpush1.bf16.msra.mxu0 0
    %152 = vmatprep.subr.bf16.mxu0 0
    %153 = vmatpush1.bf16.msra.mxu0 0
    %154 = vmatprep.subr.bf16.mxu0 0
    %155 = vmatpush1.bf16.msra.mxu0 0
    %156 = vmatprep.subr.bf16.mxu0 0
    %157 = vmatpush1.bf16.msra.mxu0 0
    %158 = vmatprep.subr.bf16.mxu0 0
    %159 = vmatpush1.bf16.msra.mxu0 0
    %160 = vmatprep.subr.bf16.mxu0 0
    %161 = vmatpush1.bf16.msra.mxu0 0
    %162 = vmatprep.subr.bf16.mxu0 0
    %163 = vmatpush1.bf16.msra.mxu0 0
    %164 = vmatprep.subr.bf16.mxu0 0
    %165 = vmatpush1.bf16.msra.mxu0 0
    %166 = vmatprep.subr.bf16.mxu0 0
    %167 = vmatpush1.bf16.msra.mxu0 0
    %168 = vmatprep.subr.bf16.mxu0 0
    %169 = vmatpush1.bf16.msra.mxu0 0
    %170 = vmatprep.subr.bf16.mxu0 0
    %171 = vmatpush1.bf16.msra.mxu0 0
    %172 = vmatprep.subr.bf16.mxu0 0
    %173 = vmatpush1.bf16.msra.mxu0 0
    %174 = vmatprep.subr.bf16.mxu0 0
    %175 = vmatpush1.bf16.msra.mxu0 0
    %176 = vmatprep.subr.bf16.mxu0 0
    %177 = vmatpush1.bf16.msra.mxu0 0
    %178 = vmatprep.mubr.bf16.mxu0 0
    %179 = vmatmul.mubr.bf16.gmra.mrb[0].mxu0 %v123
    %v180 = vpop.f32.mrb[0].mxu0
    %v181 = vadd.f32 0.0, %v180
    %v182 = vpop.f32.mrb[0].mxu0
    %v183 = vpop.f32.mrb[0].mxu0
    %v184 = vadd.f32 0.0, %v183
    %v185 = vpop.f32.mrb[0].mxu0
    %186 = vmatprep.mubr.bf16.mxu0 0
    %187 = vmatmul.mubr.bf16.gmra.mrb[0].mxu0 %v126
    %v188 = vpop.f32.mrb[0].mxu0
    %v189 = vadd.f32 0.0, %v188
    %v190 = vpop.f32.mrb[0].mxu0
    %v191 = vpop.f32.mrb[0].mxu0
    %v192 = vadd.f32 0.0, %v191
    %v193 = vpop.f32.mrb[0].mxu0
    %194 = vmatprep.mubr.bf16.mxu0 0
    %195 = vmatmul.mubr.bf16.gmra.mrb[0].mxu0 %v129
    %v196 = vpop.f32.mrb[0].mxu0
    %v197 = vadd.f32 0.0, %v196
    %v198 = vpop.f32.mrb[0].mxu0
    %v199 = vpop.f32.mrb[0].mxu0
    %v200 = vadd.f32 0.0, %v199
    %v201 = vpop.f32.mrb[0].mxu0
    %202 = vmatprep.mubr.bf16.mxu0 0
    %203 = vmatmul.mubr.bf16.gmra.mrb[0].mxu0 %v132
    %v204 = vpop.f32.mrb[0].mxu0
    %v205 = vadd.f32 0.0, %v204
    %v206 = vpop.f32.mrb[0].mxu0
    %v207 = vpop.f32.mrb[0].mxu0
    %v208 = vadd.f32 0.0, %v207
    %v209 = vpop.f32.mrb[0].mxu0
    %210 = vmatprep.mubr.bf16.mxu0 0
    %211 = vmatmul.mubr.bf16.gmra.mrb[0].mxu0 %v135
    %v212 = vpop.f32.mrb[0].mxu0
    %v213 = vadd.f32 0.0, %v212
    %v214 = vpop.f32.mrb[0].mxu0
    %v215 = vpop.f32.mrb[0].mxu0
    %v216 = vadd.f32 0.0, %v215
    %v217 = vpop.f32.mrb[0].mxu0
    %218 = vmatprep.mubr.bf16.mxu0 0
    %219 = vmatmul.mubr.bf16.gmra.mrb[0].mxu0 %v138
    %v220 = vpop.f32.mrb[0].mxu0
    %v221 = vadd.f32 0.0, %v220
    %v222 = vpop.f32.mrb[0].mxu0
    %v223 = vpop.f32.mrb[0].mxu0
    %v224 = vadd.f32 0.0, %v223
    %v225 = vpop.f32.mrb[0].mxu0
    %226 = vmatprep.mubr.bf16.mxu0 0
    %227 = vmatmul.mubr.bf16.gmra.mrb[0].mxu0 %v141
    %v228 = vpop.f32.mrb[0].mxu0
    %v229 = vadd.f32 0.0, %v228
    %v230 = vpop.f32.mrb[0].mxu0
    %v231 = vpop.f32.mrb[0].mxu0
    %v232 = vadd.f32 0.0, %v231
    %v233 = vpop.f32.mrb[0].mxu0
    %234 = vmatprep.mubr.bf16.mxu0 0
    %235 = vmatmul.mubr.bf16.gmra.mrb[0].mxu0 %v144
    %v236 = vpop.f32.mrb[0].mxu0
    %v237 = vadd.f32 0.0, %v236
    %v238 = vpop.f32.mrb[0].mxu0
    %v239 = vpop.f32.mrb[0].mxu0
    %v240 = vadd.f32 0.0, %v239
    %v241 = vpop.f32.mrb[0].mxu0
    %242 = vdwg.mxu0
    %v243 = vld [vmem:[#allocation10] sm:$0xff]
    %v244 = vld [vmem:[#allocation10 + $0x8] sm:$0xff]
    %v245 = vld [vmem:[#allocation10 + $0x10] sm:$0xff]
    %v246 = vld [vmem:[#allocation10 + $0x18] sm:$0xff]
    %v247 = vld [vmem:[#allocation10 + $0x20] sm:$0xff]
    %v248 = vld [vmem:[#allocation10 + $0x28] sm:$0xff]
    %v249 = vld [vmem:[#allocation10 + $0x30] sm:$0xff]
    %v250 = vld [vmem:[#allocation10 + $0x38] sm:$0xff]
    %v251 = vld [vmem:[#allocation10 + $0x40] sm:$0xff]
    %v252 = vld [vmem:[#allocation10 + $0x48] sm:$0xff]
    %v253 = vld [vmem:[#allocation10 + $0x50] sm:$0xff]
    %v254 = vld [vmem:[#allocation10 + $0x58] sm:$0xff]
    %v255 = vld [vmem:[#allocation10 + $0x60] sm:$0xff]
    %v256 = vld [vmem:[#allocation10 + $0x68] sm:$0xff]
    %v257 = vld [vmem:[#allocation10 + $0x70] sm:$0xff]
    %v258 = vld [vmem:[#allocation10 + $0x78] sm:$0xff]
    %260 = vset.pattern.permute.xlu0 0
    %261 = vperm.xlu0 %260, %v243
    %v262 = vpop.permute.xlu0 %261
    %265 = vset.pattern.permute.xlu0 0
    %266 = vperm.xlu0 %265, %v244
    %v267 = vpop.permute.xlu0 %266
    %270 = vset.pattern.permute.xlu0 0
    %271 = vperm.xlu0 %270, %v245
    %v272 = vpop.permute.xlu0 %271
    %275 = vset.pattern.permute.xlu0 0
    %276 = vperm.xlu0 %275, %v246
    %v277 = vpop.permute.xlu0 %276
    %280 = vset.pattern.permute.xlu0 0
    %281 = vperm.xlu0 %280, %v247
    %v282 = vpop.permute.xlu0 %281
    %285 = vset.pattern.permute.xlu0 0
    %286 = vperm.xlu0 %285, %v248
    %v287 = vpop.permute.xlu0 %286
    %290 = vset.pattern.permute.xlu0 0
    %291 = vperm.xlu0 %290, %v249
    %v292 = vpop.permute.xlu0 %291
    %295 = vset.pattern.permute.xlu0 0
    %296 = vperm.xlu0 %295, %v250
    %v297 = vpop.permute.xlu0 %296
    %300 = vset.pattern.permute.xlu0 0
    %301 = vperm.xlu0 %300, %v251
    %v302 = vpop.permute.xlu0 %301
    %305 = vset.pattern.permute.xlu0 0
    %306 = vperm.xlu0 %305, %v252
    %v307 = vpop.permute.xlu0 %306
    %310 = vset.pattern.permute.xlu0 0
    %311 = vperm.xlu0 %310, %v253
    %v312 = vpop.permute.xlu0 %311
    %315 = vset.pattern.permute.xlu0 0
    %316 = vperm.xlu0 %315, %v254
    %v317 = vpop.permute.xlu0 %316
    %320 = vset.pattern.permute.xlu0 0
    %321 = vperm.xlu0 %320, %v255
    %v322 = vpop.permute.xlu0 %321
    %325 = vset.pattern.permute.xlu0 0
    %326 = vperm.xlu0 %325, %v256
    %v327 = vpop.permute.xlu0 %326
    %330 = vset.pattern.permute.xlu0 0
    %331 = vperm.xlu0 %330, %v257
    %v332 = vpop.permute.xlu0 %331
    %335 = vset.pattern.permute.xlu0 0
    %336 = vperm.xlu0 %335, %v258
    %v337 = vpop.permute.xlu0 %336
    %v339 = vmul.f32 %v181, %v262
    %v340 = vmul.f32 %v184, %v267
    %v341 = vmul.f32 %v189, %v272
    %v342 = vmul.f32 %v192, %v277
    %v343 = vmul.f32 %v197, %v282
    %v344 = vmul.f32 %v200, %v287
    %v345 = vmul.f32 %v205, %v292
    %v346 = vmul.f32 %v208, %v297
    %v347 = vmul.f32 %v213, %v302
    %v348 = vmul.f32 %v216, %v307
    %v349 = vmul.f32 %v221, %v312
    %v350 = vmul.f32 %v224, %v317
    %v351 = vmul.f32 %v229, %v322
    %v352 = vmul.f32 %v232, %v327
    %v353 = vmul.f32 %v237, %v332
    %v354 = vmul.f32 %v240, %v337
    %v355 = vpack.c.bf16 %v340, %v339
    %v356 = vpack.c.bf16 %v342, %v341
    %v357 = vpack.c.bf16 %v344, %v343
    %v358 = vpack.c.bf16 %v346, %v345
    %v359 = vpack.c.bf16 %v348, %v347
    %v360 = vpack.c.bf16 %v350, %v349
    %v361 = vpack.c.bf16 %v352, %v351
    %v362 = vpack.c.bf16 %v354, %v353
    %v363 = vld [vmem:[#allocation7] sm:$0xf]
    %v364 = vld [vmem:[#allocation7 + $0x4] sm:$0xf]
    %v365 = vld [vmem:[#allocation7 + $0x8] sm:$0xf]
    %v366 = vld [vmem:[#allocation7 + $0xc] sm:$0xf]
    %v367 = vld [vmem:[#allocation8] sm:$0x1]
    %v369 = vlaneseq
    %v370 = vshrl.u32 %v369, 7
    %v371 = vsub.s32 0, %v370
    %v372 = vrot.slane %v367, %v371
    %v378 = vunpack.c.l.b16 %v363
    %v379 = vunpack.c.l.b16 %v364
    %v380 = vunpack.c.l.b16 %v365
    %v381 = vunpack.c.l.b16 %v366
    %v382 = vpack.c.b16 %v379, %v378
    %v383 = vpack.c.b16 %v381, %v380
    %v387 = vsel %vm121, %v355, 0
    %v390 = vsel %vm121, %v356, 0
    %v393 = vsel %vm121, %v357, 0
    %v396 = vsel %vm121, %v358, 0
    %v399 = vsel %vm121, %v359, 0
    %v402 = vsel %vm121, %v360, 0
    %v405 = vsel %vm121, %v361, 0
    %v408 = vsel %vm121, %v362, 0
    %410 = vmatprep.subr.bf16.mxu0 0
    %411 = vmatpush1.bf16.msra.mxu0 %v382
    %412 = vmatprep.subr.bf16.mxu0 0
    %413 = vmatpush1.bf16.msra.mxu0 %v383
    %414 = vmatprep.subr.bf16.mxu0 0
    %415 = vmatpush1.bf16.msra.mxu0 0
    %416 = vmatprep.subr.bf16.mxu0 0
    %417 = vmatpush1.bf16.msra.mxu0 0
    %418 = vmatprep.subr.bf16.mxu0 0
    %419 = vmatpush1.bf16.msra.mxu0 0
    %420 = vmatprep.subr.bf16.mxu0 0
    %421 = vmatpush1.bf16.msra.mxu0 0
    %422 = vmatprep.subr.bf16.mxu0 0
    %423 = vmatpush1.bf16.msra.mxu0 0
    %424 = vmatprep.subr.bf16.mxu0 0
    %425 = vmatpush1.bf16.msra.mxu0 0
    %426 = vmatprep.subr.bf16.mxu0 0
    %427 = vmatpush1.bf16.msra.mxu0 0
    %428 = vmatprep.subr.bf16.mxu0 0
    %429 = vmatpush1.bf16.msra.mxu0 0
    %430 = vmatprep.subr.bf16.mxu0 0
    %431 = vmatpush1.bf16.msra.mxu0 0
    %432 = vmatprep.subr.bf16.mxu0 0
    %433 = vmatpush1.bf16.msra.mxu0 0
    %434 = vmatprep.subr.bf16.mxu0 0
    %435 = vmatpush1.bf16.msra.mxu0 0
    %436 = vmatprep.subr.bf16.mxu0 0
    %437 = vmatpush1.bf16.msra.mxu0 0
    %438 = vmatprep.subr.bf16.mxu0 0
    %439 = vmatpush1.bf16.msra.mxu0 0
    %440 = vmatprep.subr.bf16.mxu0 0
    %441 = vmatpush1.bf16.msra.mxu0 0
    %442 = vmatprep.mubr.bf16.mxu0 0
    %443 = vmatmul.mubr.bf16.gmra.mrb[0].mxu0 %v387
    %v444 = vpop.f32.mrb[0].mxu0
    %v445 = vadd.f32 %v372, %v444
    %v446 = vpop.f32.mrb[0].mxu0
    %v447 = vpop.f32.mrb[0].mxu0
    %v448 = vadd.f32 %v372, %v447
    %v449 = vpop.f32.mrb[0].mxu0
    %450 = vmatprep.mubr.bf16.mxu0 0
    %451 = vmatmul.mubr.bf16.gmra.mrb[0].mxu0 %v390
    %v452 = vpop.f32.mrb[0].mxu0
    %v453 = vadd.f32 %v372, %v452
    %v454 = vpop.f32.mrb[0].mxu0
    %v455 = vpop.f32.mrb[0].mxu0
    %v456 = vadd.f32 %v372, %v455
    %v457 = vpop.f32.mrb[0].mxu0
    %458 = vmatprep.mubr.bf16.mxu0 0
    %459 = vmatmul.mubr.bf16.gmra.mrb[0].mxu0 %v393
    %v460 = vpop.f32.mrb[0].mxu0
    %v461 = vadd.f32 %v372, %v460
    %v462 = vpop.f32.mrb[0].mxu0
    %v463 = vpop.f32.mrb[0].mxu0
    %v464 = vadd.f32 %v372, %v463
    %v465 = vpop.f32.mrb[0].mxu0
    %466 = vmatprep.mubr.bf16.mxu0 0
    %467 = vmatmul.mubr.bf16.gmra.mrb[0].mxu0 %v396
    %v468 = vpop.f32.mrb[0].mxu0
    %v469 = vadd.f32 %v372, %v468
    %v470 = vpop.f32.mrb[0].mxu0
    %v471 = vpop.f32.mrb[0].mxu0
    %v472 = vadd.f32 %v372, %v471
    %v473 = vpop.f32.mrb[0].mxu0
    %474 = vmatprep.mubr.bf16.mxu0 0
    %475 = vmatmul.mubr.bf16.gmra.mrb[0].mxu0 %v399
    %v476 = vpop.f32.mrb[0].mxu0
    %v477 = vadd.f32 %v372, %v476
    %v478 = vpop.f32.mrb[0].mxu0
    %v479 = vpop.f32.mrb[0].mxu0
    %v480 = vadd.f32 %v372, %v479
    %v481 = vpop.f32.mrb[0].mxu0
    %482 = vmatprep.mubr.bf16.mxu0 0
    %483 = vmatmul.mubr.bf16.gmra.mrb[0].mxu0 %v402
    %v484 = vpop.f32.mrb[0].mxu0
    %v485 = vadd.f32 %v372, %v484
    %v486 = vpop.f32.mrb[0].mxu0
    %v487 = vpop.f32.mrb[0].mxu0
    %v488 = vadd.f32 %v372, %v487
    %v489 = vpop.f32.mrb[0].mxu0
    %490 = vmatprep.mubr.bf16.mxu0 0
    %491 = vmatmul.mubr.bf16.gmra.mrb[0].mxu0 %v405
    %v492 = vpop.f32.mrb[0].mxu0
    %v493 = vadd.f32 %v372, %v492
    %v494 = vpop.f32.mrb[0].mxu0
    %v495 = vpop.f32.mrb[0].mxu0
    %v496 = vadd.f32 %v372, %v495
    %v497 = vpop.f32.mrb[0].mxu0
    %498 = vmatprep.mubr.bf16.mxu0 0
    %499 = vmatmul.mubr.bf16.gmra.mrb[0].mxu0 %v408
    %v500 = vpop.f32.mrb[0].mxu0
    %v501 = vadd.f32 %v372, %v500
    %v502 = vpop.f32.mrb[0].mxu0
    %v503 = vpop.f32.mrb[0].mxu0
    %v504 = vadd.f32 %v372, %v503
    %v505 = vpop.f32.mrb[0].mxu0
    %506 = vdwg.mxu0
    %507 = vmax.xlane.f32.xlu0 %v445
    %v508 = vpop.xlane.xlu0 %507
    %509 = vmax.xlane.f32.xlu0 %v448
    %v510 = vpop.xlane.xlu0 %509
    %511 = vmax.xlane.f32.xlu0 %v453
    %v512 = vpop.xlane.xlu0 %511
    %513 = vmax.xlane.f32.xlu0 %v456
    %v514 = vpop.xlane.xlu0 %513
    %515 = vmax.xlane.f32.xlu0 %v461
    %v516 = vpop.xlane.xlu0 %515
    %517 = vmax.xlane.f32.xlu0 %v464
    %v518 = vpop.xlane.xlu0 %517
    %519 = vmax.xlane.f32.xlu0 %v469
    %v520 = vpop.xlane.xlu0 %519
    %521 = vmax.xlane.f32.xlu0 %v472
    %v522 = vpop.xlane.xlu0 %521
    %523 = vmax.xlane.f32.xlu0 %v477
    %v524 = vpop.xlane.xlu0 %523
    %525 = vmax.xlane.f32.xlu0 %v480
    %v526 = vpop.xlane.xlu0 %525
    %527 = vmax.xlane.f32.xlu0 %v485
    %v528 = vpop.xlane.xlu0 %527
    %529 = vmax.xlane.f32.xlu0 %v488
    %v530 = vpop.xlane.xlu0 %529
    %531 = vmax.xlane.f32.xlu0 %v493
    %v532 = vpop.xlane.xlu0 %531
    %533 = vmax.xlane.f32.xlu0 %v496
    %v534 = vpop.xlane.xlu0 %533
    %535 = vmax.xlane.f32.xlu0 %v501
    %v536 = vpop.xlane.xlu0 %535
    %537 = vmax.xlane.f32.xlu0 %v504
    %v538 = vpop.xlane.xlu0 %537
    %v539 = vsub.f32 %v445, %v508
    %v540 = vsub.f32 %v448, %v510
    %v541 = vsub.f32 %v453, %v512
    %v542 = vsub.f32 %v456, %v514
    %v543 = vsub.f32 %v461, %v516
    %v544 = vsub.f32 %v464, %v518
    %v545 = vsub.f32 %v469, %v520
    %v546 = vsub.f32 %v472, %v522
    %v547 = vsub.f32 %v477, %v524
    %v548 = vsub.f32 %v480, %v526
    %v549 = vsub.f32 %v485, %v528
    %v550 = vsub.f32 %v488, %v530
    %v551 = vsub.f32 %v493, %v532
    %v552 = vsub.f32 %v496, %v534
    %v553 = vsub.f32 %v501, %v536
    %v554 = vsub.f32 %v504, %v538
    %v555 = vmul.f32 %v539, 1.442695
    %v556 = vpow.pop %v555
    %v557 = vmul.f32 %v540, 1.442695
    %v558 = vpow.pop %v557
    %v559 = vmul.f32 %v541, 1.442695
    %v560 = vpow.pop %v559
    %v561 = vmul.f32 %v542, 1.442695
    %v562 = vpow.pop %v561
    %v563 = vmul.f32 %v543, 1.442695
    %v564 = vpow.pop %v563
    %v565 = vmul.f32 %v544, 1.442695
    %v566 = vpow.pop %v565
    %v567 = vmul.f32 %v545, 1.442695
    %v568 = vpow.pop %v567
    %v569 = vmul.f32 %v546, 1.442695
    %v570 = vpow.pop %v569
    %v571 = vmul.f32 %v547, 1.442695
    %v572 = vpow.pop %v571
    %v573 = vmul.f32 %v548, 1.442695
    %v574 = vpow.pop %v573
    %v575 = vmul.f32 %v549, 1.442695
    %v576 = vpow.pop %v575
    %v577 = vmul.f32 %v550, 1.442695
    %v578 = vpow.pop %v577
    %v579 = vmul.f32 %v551, 1.442695
    %v580 = vpow.pop %v579
    %v581 = vmul.f32 %v552, 1.442695
    %v582 = vpow.pop %v581
    %v583 = vmul.f32 %v553, 1.442695
    %v584 = vpow.pop %v583
    %v585 = vmul.f32 %v554, 1.442695
    %v586 = vpow.pop %v585
    %587 = vadd.xlane.f32.xlu0 %v556
    %v588 = vpop.xlane.xlu0 %587
    %589 = vadd.xlane.f32.xlu0 %v558
    %v590 = vpop.xlane.xlu0 %589
    %591 = vadd.xlane.f32.xlu0 %v560
    %v592 = vpop.xlane.xlu0 %591
    %593 = vadd.xlane.f32.xlu0 %v562
    %v594 = vpop.xlane.xlu0 %593
    %595 = vadd.xlane.f32.xlu0 %v564
    %v596 = vpop.xlane.xlu0 %595
    %597 = vadd.xlane.f32.xlu0 %v566
    %v598 = vpop.xlane.xlu0 %597
    %599 = vadd.xlane.f32.xlu0 %v568
    %v600 = vpop.xlane.xlu0 %599
    %601 = vadd.xlane.f32.xlu0 %v570
    %v602 = vpop.xlane.xlu0 %601
    %603 = vadd.xlane.f32.xlu0 %v572
    %v604 = vpop.xlane.xlu0 %603
    %605 = vadd.xlane.f32.xlu0 %v574
    %v606 = vpop.xlane.xlu0 %605
    %607 = vadd.xlane.f32.xlu0 %v576
    %v608 = vpop.xlane.xlu0 %607
    %609 = vadd.xlane.f32.xlu0 %v578
    %v610 = vpop.xlane.xlu0 %609
    %611 = vadd.xlane.f32.xlu0 %v580
    %v612 = vpop.xlane.xlu0 %611
    %613 = vadd.xlane.f32.xlu0 %v582
    %v614 = vpop.xlane.xlu0 %613
    %615 = vadd.xlane.f32.xlu0 %v584
    %v616 = vpop.xlane.xlu0 %615
    %617 = vadd.xlane.f32.xlu0 %v586
    %v618 = vpop.xlane.xlu0 %617
    %v619 = vlog2.pop %v588
    %v620 = vmul.f32 %v619, 0.6931472
    %v621 = vlog2.pop %v590
    %v622 = vmul.f32 %v621, 0.6931472
    %v623 = vlog2.pop %v592
    %v624 = vmul.f32 %v623, 0.6931472
    %v625 = vlog2.pop %v594
    %v626 = vmul.f32 %v625, 0.6931472
    %v627 = vlog2.pop %v596
    %v628 = vmul.f32 %v627, 0.6931472
    %v629 = vlog2.pop %v598
    %v630 = vmul.f32 %v629, 0.6931472
    %v631 = vlog2.pop %v600
    %v632 = vmul.f32 %v631, 0.6931472
    %v633 = vlog2.pop %v602
    %v634 = vmul.f32 %v633, 0.6931472
    %v635 = vlog2.pop %v604
    %v636 = vmul.f32 %v635, 0.6931472
    %v637 = vlog2.pop %v606
    %v638 = vmul.f32 %v637, 0.6931472
    %v639 = vlog2.pop %v608
    %v640 = vmul.f32 %v639, 0.6931472
    %v641 = vlog2.pop %v610
    %v642 = vmul.f32 %v641, 0.6931472
    %v643 = vlog2.pop %v612
    %v644 = vmul.f32 %v643, 0.6931472
    %v645 = vlog2.pop %v614
    %v646 = vmul.f32 %v645, 0.6931472
    %v647 = vlog2.pop %v616
    %v648 = vmul.f32 %v647, 0.6931472
    %v649 = vlog2.pop %v618
    %v650 = vmul.f32 %v649, 0.6931472
    %v651 = vadd.f32 %v508, %v620
    %v652 = vadd.f32 %v510, %v622
    %v653 = vadd.f32 %v512, %v624
    %v654 = vadd.f32 %v514, %v626
    %v655 = vadd.f32 %v516, %v628
    %v656 = vadd.f32 %v518, %v630
    %v657 = vadd.f32 %v520, %v632
    %v658 = vadd.f32 %v522, %v634
    %v659 = vadd.f32 %v524, %v636
    %v660 = vadd.f32 %v526, %v638
    %v661 = vadd.f32 %v528, %v640
    %v662 = vadd.f32 %v530, %v642
    %v663 = vadd.f32 %v532, %v644
    %v664 = vadd.f32 %v534, %v646
    %v665 = vadd.f32 %v536, %v648
    %v666 = vadd.f32 %v538, %v650
    %v667 = vsub.f32 %v445, %v651
    %v668 = vsub.f32 %v448, %v652
    %v669 = vsub.f32 %v453, %v653
    %v670 = vsub.f32 %v456, %v654
    %v671 = vsub.f32 %v461, %v655
    %v672 = vsub.f32 %v464, %v656
    %v673 = vsub.f32 %v469, %v657
    %v674 = vsub.f32 %v472, %v658
    %v675 = vsub.f32 %v477, %v659
    %v676 = vsub.f32 %v480, %v660
    %v677 = vsub.f32 %v485, %v661
    %v678 = vsub.f32 %v488, %v662
    %v679 = vsub.f32 %v493, %v663
    %v680 = vsub.f32 %v496, %v664
    %v681 = vsub.f32 %v501, %v665
    %v682 = vsub.f32 %v504, %v666
    %683 = vst [vmem:[#allocation11] sm:$0xff] %v667
    %684 = vst [vmem:[#allocation11 + $0x8] sm:$0xff] %v668
    %685 = vst [vmem:[#allocation11 + $0x10] sm:$0xff] %v669
    %686 = vst [vmem:[#allocation11 + $0x18] sm:$0xff] %v670
    %687 = vst [vmem:[#allocation11 + $0x20] sm:$0xff] %v671
    %688 = vst [vmem:[#allocation11 + $0x28] sm:$0xff] %v672
    %689 = vst [vmem:[#allocation11 + $0x30] sm:$0xff] %v673
    %690 = vst [vmem:[#allocation11 + $0x38] sm:$0xff] %v674
    %691 = vst [vmem:[#allocation11 + $0x40] sm:$0xff] %v675
    %692 = vst [vmem:[#allocation11 + $0x48] sm:$0xff] %v676
    %693 = vst [vmem:[#allocation11 + $0x50] sm:$0xff] %v677
    %694 = vst [vmem:[#allocation11 + $0x58] sm:$0xff] %v678
    %695 = vst [vmem:[#allocation11 + $0x60] sm:$0xff] %v679
    %696 = vst [vmem:[#allocation11 + $0x68] sm:$0xff] %v680
    %697 = vst [vmem:[#allocation11 + $0x70] sm:$0xff] %v681
    %698 = vst [vmem:[#allocation11 + $0x78] sm:$0xff] %v682
    // Predicated region
    $region42: #{hyperconv_forward.3} parent=1 // pred_check
      _
    $region43: #{hyperconv_forward.3} parent=1 // pred_check_branch
      %700 = sbr.rel (0) target = $region45
    $region44: #{hyperconv_forward.3} parent=1 // pred_region
      %s702 = ssub.s32 2048, 2048
      %703 = vsyncadd [#allocation4], %s702
      %s704 = sshll.u32 [#allocation11], 4
      %s705 = int_to_ptr.vmem [resolvable:$true] %s704
      %710 = dma.vmem_to_hbm [thread:$0]  %s705, 2048, %s5, [#allocation4], 128, 128, 8
    $region45: #{hyperconv_forward.3} parent=1 // pred_fallthru
      _
    // Predicated region
    $region46: #{hyperconv_forward.3} parent=1 // pred_check
      _
    $region47: #{hyperconv_forward.3} parent=1 // pred_check_branch
      %712 = sbr.rel (0) target = $region49
    $region48: #{hyperconv_forward.3} parent=1 // pred_region
      %713 = dma.done [#allocation4], 2048
    $region49: #{hyperconv_forward.3} parent=1 // pred_fallthru
      _
    %714 = vsyncpa [#allocation3], 1
    %715 = vsyncpa [#allocation6], 1
    %716 = vsyncpa [#allocation9], 1
    %717 = vsyncpa [#allocation4], 1

// kernel: hyperconv_forward.2
$region0: #{hyperconv_forward.2}
  #allocation0 [shape = 'u32[]', space=smem, size = 0x4, offset = 0x4, fixed_abs, tag = 'smem constant byte address 0x4 - core index']
  #allocation1 [shape = 'u32[144,128]{1,0:T(1,128)}', space=vmem, size = 0x12000, scoped, tag = 'internal scratch']
  #allocation2 [shape = 'f32[32,16]{1,0:T(8,128)}', space=vmem, size = 0x4000, scoped, tag = 'scratch operand']
  #allocation3 [shape = 'f32[32,32]{1,0:T(8,128)}', space=vmem, size = 0x4000, scoped, tag = 'scratch operand']
  #allocation4 [shape = 'bf16[32,16]{1,0:T(16,128)(2,1)}', space=vmem, size = 0x2000, scoped, tag = 'scratch operand']
  %s0 = inlined_call_operand.hbm [shape: s8[32,128], index: 0, kind: input, shape index: {}]
  %s1 = inlined_call_operand.hbm [shape: bf16[128,16], index: 1, kind: input, shape index: {}]
  %s2 = inlined_call_operand.hbm [shape: bf16[16,32], index: 2, kind: input, shape index: {}]
  %s3 = inlined_call_operand.hbm [shape: f32[1,32], index: 3, kind: input, shape index: {}]
  %s4 = inlined_call_operand.hbm [shape: f32[128,1], index: 4, kind: input, shape index: {}]
  %s5 = inlined_call_operand.hbm [shape: f32[32,1], index: 5, kind: input, shape index: {}]
  %s6 = inlined_call_operand.hbm [shape: bf16[32,32], index: 6, kind: output, shape index: {}]
  %s7 = sld [smem:[#allocation0]]
  $region101: #{hyperconv_forward.2} parent=0
    _
  %s9 = ssub.s32 1, %s7
  %s10 = scalar_select 0, %s9, %s7
  $region1: #{hyperconv_forward.2} parent=0
    #allocation5 [shape = 'u8[4096]{0}', space=vmem, size = 0x1000, scoped, tag = 'input window, operand 0, single buffered']
    #allocation6 [shape = 's32[2]{0}', space=sflag, size = 0x8, scoped, tag = 'scoped memory for hyperconv_forward.2']
    #allocation7 [shape = 's32[2]{0}', space=sflag, size = 0x8, scoped, tag = 'scoped memory for hyperconv_forward.2']
    #allocation8 [shape = 'u8[65536]{0}', space=vmem, size = 0x10000, scoped, tag = 'input window, operand 1']
    #allocation9 [shape = 's32[2]{0}', space=sflag, size = 0x8, scoped, tag = 'scoped memory for hyperconv_forward.2']
    #allocation10 [shape = 'u8[4096]{0}', space=vmem, size = 0x1000, scoped, tag = 'input window, operand 2, single buffered']
    #allocation11 [shape = 'u8[512]{0}', space=vmem, size = 0x400, scoped, tag = 'input window, operand 3, single buffered']
    #allocation12 [shape = 's32[1]{0}', space=sflag, size = 0x4, scoped, tag = 'scoped memory for hyperconv_forward.2']
    #allocation13 [shape = 'u8[65536]{0}', space=vmem, size = 0x10000, scoped, tag = 'input window, operand 4, single buffered']
    #allocation14 [shape = 'u8[16384]{0}', space=vmem, size = 0x4000, scoped, tag = 'input window, operand 5, single buffered']
    #allocation15 [shape = 's32[1]{0}', space=sflag, size = 0x4, scoped, tag = 'scoped memory for hyperconv_forward.2']
    #allocation16 [shape = 'u8[8192]{0}', space=vmem, size = 0x2000, scoped, tag = 'output window, operand 0, single buffered']
    %11 = vsyncpa [#allocation6], 0
    %12 = vsyncpa [#allocation9], 0
    %s13 = scalar_lea.sflag [#allocation9], 1
    %14 = vsyncpa %s13, 0
    %15 = vsyncpa [#allocation12], 0
    %16 = vsyncpa [#allocation15], 0
    %17 = vsyncpa [#allocation7], 0
    loop: start=0, step=1, limit=4
    $region2: #{hyperconv_forward.2} parent=1 // loop_pre_header
      _
    $region3: #{hyperconv_forward.2} parent=1 // loop_header
      %s19 = sphi 0, %s23
      %p20 = scmp.ge.s32.totalorder %s19, 4
      %s26 = sphi 0, %s38
      %s27 = sphi 0, %s34
      %s28 = sphi 0, %s26
      %s29 = sphi 0, %s27
      %s30 = sphi 0, %s28
      %s31 = sphi 0, %s29
      %s41 = sphi 0, %s43
      %s44 = sphi 0, %s41
      %s45 = sphi 0, %s44
      %s61 = sphi 0, %s45
      %s71 = sphi 0, %s73
      %s74 = sphi 0, %s71
      %s75 = sphi 0, %s74
      %s91 = sphi 0, %s75
      %s95 = sphi 0, %s95
      %s97 = sphi 0, %s95
      %s98 = sphi 0, %s97
      %s112 = sphi 0, %s98
      %s116 = sphi 0, %s116
      %s118 = sphi 0, %s116
      %s119 = sphi 0, %s118
      %s133 = sphi 0, %s119
      %s139 = sphi 0, %s141
      %s142 = sphi 0, %s139
      %s143 = sphi 0, %s142
      %s159 = sphi 0, %s143
      %s163 = sphi 0, %s163
      %s165 = sphi 0, %s163
      %s166 = sphi 0, %s165
      %s180 = sphi 0, %s166
      %s184 = sphi 0, %s184
      %s186 = sphi 0, %s184
      %s187 = sphi 0, %s186
      %s201 = sphi 0, %s187
    $region4: #{hyperconv_forward.2} parent=1 // loop_header_branch
      %22 = sbr.rel (%p20) target = $region8
    $region5: #{hyperconv_forward.2} parent=1 // loop_body
      %s24 = ssub.s32 %s19, 1
      %s25 = ssub.s32 %s19, 2
      %s32 = sadd.s32 1, %s27
      %p33 = scmp.ge.s32.totalorder %s32, 1
      %s34 = scalar_select %p33, 0, %s32
      %s35 = sadd.s32 1, %s26
      %s36 = scalar_select %p33, %s35, %s26
      %p37 = scmp.ge.s32.totalorder %s36, 2
      %s38 = scalar_select %p37, 0, %s36
      %s39 = ssub.s32 %s27, %s34
      %p40 = scmp.eq.s32.totalorder %s39, 0
      %s42 = sadd.s32 %s41, 1
      %s43 = scalar_select %p40, %s41, %s42
      %p46 = pneg %p40
      %p47 = scmp.eq.s32.totalorder %s19, 1
      %p48 = por %p46, %p47
      %p49 = scmp.ne.s32.totalorder %s41, %s44
      %p50 = scmp.eq.s32.totalorder %s19, 0
      %p51 = por %p49, %p50
      %p52 = scmp.ne.s32.totalorder %s41, %s44
      %p53 = scmp.eq.s32.totalorder %s24, 1
      %p54 = por %p52, %p53
      %p55 = scmp.ne.s32.totalorder %s44, %s45
      %p56 = scmp.eq.s32.totalorder %s24, 0
      %p57 = por %p55, %p56
      %p58 = scmp.ne.s32.totalorder %s44, %s45
      %p59 = scmp.eq.s32.totalorder %s25, 1
      %p60 = por %p58, %p59
      %p62 = scmp.ne.s32.totalorder %s45, %s61
      %p63 = scmp.eq.s32.totalorder %s25, 0
      %p64 = por %p62, %p63
      %p65 = scmp.eq.s32.totalorder %s26, 0
      %s66 = scalar_select %p65, %s27, 0
      %p67 = scmp.eq.s32.totalorder %s38, 0
      %s68 = scalar_select %p67, %s34, 0
      %s69 = ssub.s32 %s66, %s68
      %p70 = scmp.eq.s32.totalorder %s69, 0
      %s72 = sadd.s32 %s71, 1
      %s73 = scalar_select %p70, %s71, %s72
      %p76 = pneg %p70
      %p77 = scmp.eq.s32.totalorder %s19, 1
      %p78 = por %p76, %p77
      %p79 = scmp.ne.s32.totalorder %s71, %s74
      %p80 = scmp.eq.s32.totalorder %s19, 0
      %p81 = por %p79, %p80
      %p82 = scmp.ne.s32.totalorder %s71, %s74
      %p83 = scmp.eq.s32.totalorder %s24, 1
      %p84 = por %p82, %p83
      %p85 = scmp.ne.s32.totalorder %s74, %s75
      %p86 = scmp.eq.s32.totalorder %s24, 0
      %p87 = por %p85, %p86
      %p88 = scmp.ne.s32.totalorder %s74, %s75
      %p89 = scmp.eq.s32.totalorder %s25, 1
      %p90 = por %p88, %p89
      %p92 = scmp.ne.s32.totalorder %s75, %s91
      %p93 = scmp.eq.s32.totalorder %s25, 0
      %p94 = por %p92, %p93
      %s96 = sadd.s32 %s95, 1
      %p99 = scmp.eq.s32.totalorder %s19, 1
      %p100 = scmp.ne.s32.totalorder %s95, %s97
      %p101 = scmp.eq.s32.totalorder %s19, 0
      %p102 = por %p100, %p101
      %p103 = scmp.ne.s32.totalorder %s95, %s97
      %p104 = scmp.eq.s32.totalorder %s24, 1
      %p105 = por %p103, %p104
      %p106 = scmp.ne.s32.totalorder %s97, %s98
      %p107 = scmp.eq.s32.totalorder %s24, 0
      %p108 = por %p106, %p107
      %p109 = scmp.ne.s32.totalorder %s97, %s98
      %p110 = scmp.eq.s32.totalorder %s25, 1
      %p111 = por %p109, %p110
      %p113 = scmp.ne.s32.totalorder %s98, %s112
      %p114 = scmp.eq.s32.totalorder %s25, 0
      %p115 = por %p113, %p114
      %s117 = sadd.s32 %s116, 1
      %p120 = scmp.eq.s32.totalorder %s19, 1
      %p121 = scmp.ne.s32.totalorder %s116, %s118
      %p122 = scmp.eq.s32.totalorder %s19, 0
      %p123 = por %p121, %p122
      %p124 = scmp.ne.s32.totalorder %s116, %s118
      %p125 = scmp.eq.s32.totalorder %s24, 1
      %p126 = por %p124, %p125
      %p127 = scmp.ne.s32.totalorder %s118, %s119
      %p128 = scmp.eq.s32.totalorder %s24, 0
      %p129 = por %p127, %p128
      %p130 = scmp.ne.s32.totalorder %s118, %s119
      %p131 = scmp.eq.s32.totalorder %s25, 1
      %p132 = por %p130, %p131
      %p134 = scmp.ne.s32.totalorder %s119, %s133
      %p135 = scmp.eq.s32.totalorder %s25, 0
      %p136 = por %p134, %p135
      %s137 = ssub.s32 %s27, %s34
      %p138 = scmp.eq.s32.totalorder %s137, 0
      %s140 = sadd.s32 %s139, 1
      %s141 = scalar_select %p138, %s139, %s140
      %p144 = pneg %p138
      %p145 = scmp.eq.s32.totalorder %s19, 1
      %p146 = por %p144, %p145
      %p147 = scmp.ne.s32.totalorder %s139, %s142
      %p148 = scmp.eq.s32.totalorder %s19, 0
      %p149 = por %p147, %p148
      %p150 = scmp.ne.s32.totalorder %s139, %s142
      %p151 = scmp.eq.s32.totalorder %s24, 1
      %p152 = por %p150, %p151
      %p153 = scmp.ne.s32.totalorder %s142, %s143
      %p154 = scmp.eq.s32.totalorder %s24, 0
      %p155 = por %p153, %p154
      %p156 = scmp.ne.s32.totalorder %s142, %s143
      %p157 = scmp.eq.s32.totalorder %s25, 1
      %p158 = por %p156, %p157
      %p160 = scmp.ne.s32.totalorder %s143, %s159
      %p161 = scmp.eq.s32.totalorder %s25, 0
      %p162 = por %p160, %p161
      %s164 = sadd.s32 %s163, 1
      %p167 = scmp.eq.s32.totalorder %s19, 1
      %p168 = scmp.ne.s32.totalorder %s163, %s165
      %p169 = scmp.eq.s32.totalorder %s19, 0
      %p170 = por %p168, %p169
      %p171 = scmp.ne.s32.totalorder %s163, %s165
      %p172 = scmp.eq.s32.totalorder %s24, 1
      %p173 = por %p171, %p172
      %p174 = scmp.ne.s32.totalorder %s165, %s166
      %p175 = scmp.eq.s32.totalorder %s24, 0
      %p176 = por %p174, %p175
      %p177 = scmp.ne.s32.totalorder %s165, %s166
      %p178 = scmp.eq.s32.totalorder %s25, 1
      %p179 = por %p177, %p178
      %p181 = scmp.ne.s32.totalorder %s166, %s180
      %p182 = scmp.eq.s32.totalorder %s25, 0
      %p183 = por %p181, %p182
      %s185 = sadd.s32 %s184, 1
      %p188 = scmp.eq.s32.totalorder %s19, 1
      %p189 = scmp.ne.s32.totalorder %s184, %s186
      %p190 = scmp.eq.s32.totalorder %s19, 0
      %p191 = por %p189, %p190
      %p192 = scmp.ne.s32.totalorder %s184, %s186
      %p193 = scmp.eq.s32.totalorder %s24, 1
      %p194 = por %p192, %p193
      %p195 = scmp.ne.s32.totalorder %s186, %s187
      %p196 = scmp.eq.s32.totalorder %s24, 0
      %p197 = por %p195, %p196
      %p198 = scmp.ne.s32.totalorder %s186, %s187
      %p199 = scmp.eq.s32.totalorder %s25, 1
      %p200 = por %p198, %p199
      %p202 = scmp.ne.s32.totalorder %s187, %s201
      %p203 = scmp.eq.s32.totalorder %s25, 0
      %p204 = por %p202, %p203
      %p205 = scmp.le.s32.totalorder 1, %s19
      %p206 = scmp.lt.s32.totalorder %s19, 3
      %p207 = pnand %p205, %p206
      %p208 = pneg %p207
      // Predicated region
      $region9: #{hyperconv_forward.2} parent=5 // pred_check
        _
      $region10: #{hyperconv_forward.2} parent=5 // pred_check_branch
        %210 = sbr.rel (%p207) target = $region12
      $region11: #{hyperconv_forward.2} parent=5 // pred_region
        %s211 = ssub.s32 %s19, 1
        // Predicated region
        $region13: #{hyperconv_forward.2} parent=11 // pred_check
          %p212 = pneg %p57
        $region14: #{hyperconv_forward.2} parent=11 // pred_check_branch
          %214 = sbr.rel (%p212) target = $region16
        $region15: #{hyperconv_forward.2} parent=11 // pred_region
          %s216 = ssub.s32 128, 128
          %217 = vsyncadd [#allocation6], %s216
          %s218 = smul.addr %s29, 128
          %s219 = scalar_lea.hbm %s0, %s218
          %s221 = sshll.u32 [#allocation5], 4
          %s222 = int_to_ptr.vmem [resolvable:$true] %s221
          %224 = dma.hbm_to_vmem [thread:$0]  %s219, 128, %s222, [#allocation6]
        $region16: #{hyperconv_forward.2} parent=11 // pred_fallthru
          _
        // Predicated region
        $region17: #{hyperconv_forward.2} parent=11 // pred_check
          %p225 = pneg %p108
        $region18: #{hyperconv_forward.2} parent=11 // pred_check_branch
          %227 = sbr.rel (%p225) target = $region20
        $region19: #{hyperconv_forward.2} parent=11 // pred_region
          %s229 = ssub.s32 128, 128
          %230 = vsyncadd [#allocation9], %s229
          %s231 = sshll.u32 [#allocation10], 4
          %s232 = int_to_ptr.vmem [resolvable:$true] %s231
          %237 = dma.hbm_to_vmem [thread:$0]  %s2, 128, %s232, [#allocation9], 64, 64, 4
        $region20: #{hyperconv_forward.2} parent=11 // pred_fallthru
          _
        // Predicated region
        $region21: #{hyperconv_forward.2} parent=11 // pred_check
          %p238 = pneg %p129
        $region22: #{hyperconv_forward.2} parent=11 // pred_check_branch
          %240 = sbr.rel (%p238) target = $region24
        $region23: #{hyperconv_forward.2} parent=11 // pred_region
          %s242 = ssub.s32 16, 16
          %243 = vsyncadd [#allocation12], %s242
          %s245 = sshll.u32 [#allocation11], 4
          %s246 = int_to_ptr.vmem [resolvable:$true] %s245
          %248 = dma.hbm_to_vmem [thread:$0]  %s3, 16, %s246, [#allocation12]
        $region24: #{hyperconv_forward.2} parent=11 // pred_fallthru
          _
        // Predicated region
        $region25: #{hyperconv_forward.2} parent=11 // pred_check
          %p249 = pneg %p155
        $region26: #{hyperconv_forward.2} parent=11 // pred_check_branch
          %251 = sbr.rel (%p249) target = $region28
        $region27: #{hyperconv_forward.2} parent=11 // pred_region
          %s252 = smul.u32 16, %s29
          %s254 = ssub.s32 2048, 2048
          %255 = vsyncadd [#allocation12], %s254
          %s256 = smul.addr %s252, 128
          %s257 = scalar_lea.hbm %s4, %s256
          %s258 = sshll.u32 [#allocation13], 4
          %s259 = int_to_ptr.vmem [resolvable:$true] %s258
          %264 = dma.hbm_to_vmem [thread:$0]  %s257, 2048, %s259, [#allocation12], 128, 128, 8
        $region28: #{hyperconv_forward.2} parent=11 // pred_fallthru
          _
        // Predicated region
        $region29: #{hyperconv_forward.2} parent=11 // pred_check
          %p265 = pneg %p176
        $region30: #{hyperconv_forward.2} parent=11 // pred_check_branch
          %267 = sbr.rel (%p265) target = $region32
        $region31: #{hyperconv_forward.2} parent=11 // pred_region
          %s269 = ssub.s32 512, 512
          %270 = vsyncadd [#allocation15], %s269
          %s271 = sshll.u32 [#allocation14], 4
          %s272 = int_to_ptr.vmem [resolvable:$true] %s271
          %277 = dma.hbm_to_vmem [thread:$0]  %s5, 512, %s272, [#allocation15], 128, 128, 8
        $region32: #{hyperconv_forward.2} parent=11 // pred_fallthru
          _
      $region12: #{hyperconv_forward.2} parent=5 // pred_fallthru
        _
      %p278 = scmp.lt.s32.totalorder %s19, 2
      // Predicated region
      $region33: #{hyperconv_forward.2} parent=5 // pred_check
        %p279 = pneg %p278
      $region34: #{hyperconv_forward.2} parent=5 // pred_check_branch
        %281 = sbr.rel (%p279) target = $region36
      $region35: #{hyperconv_forward.2} parent=5 // pred_region
        // Predicated region
        $region37: #{hyperconv_forward.2} parent=35 // pred_check
          %p282 = pneg %p81
        $region38: #{hyperconv_forward.2} parent=35 // pred_check_branch
          %284 = sbr.rel (%p282) target = $region40
        $region39: #{hyperconv_forward.2} parent=35 // pred_region
          %s285 = sand.u32 %s19, 1
          %s286 = scalar_lea.sflag [#allocation9], %s285
          %s287 = sand.u32 %s71, 1
          %s288 = smul.addr %s287, 64
          %s289 = scalar_lea.vmem [#allocation8], %s288
          %p290 = scmp.eq.s32.totalorder %s26, 0
          %s291 = scalar_select %p290, %s27, 0
          %s292 = smul.u32 16, %s291
          %s294 = ssub.s32 1024, 1024
          %295 = vsyncadd %s286, %s294
          %s296 = smul.addr %s292, 64
          %s297 = scalar_lea.hbm %s1, %s296
          %s298 = sshll.u32 %s289, 4
          %s299 = int_to_ptr.vmem [resolvable:$true] %s298
          %304 = dma.hbm_to_vmem [thread:$0]  %s297, 1024, %s299, %s286, 64, 64, 4
        $region40: #{hyperconv_forward.2} parent=35 // pred_fallthru
          _
      $region36: #{hyperconv_forward.2} parent=5 // pred_fallthru
        _
      %p305 = scmp.le.s32.totalorder 1, %s19
      %p306 = scmp.lt.s32.totalorder %s19, 3
      %p307 = pnand %p305, %p306
      %p308 = pneg %p307
      // Predicated region
      $region41: #{hyperconv_forward.2} parent=5 // pred_check
        _
      $region42: #{hyperconv_forward.2} parent=5 // pred_check_branch
        %310 = sbr.rel (%p307) target = $region44
      $region43: #{hyperconv_forward.2} parent=5 // pred_region
        %s311 = ssub.s32 %s19, 1
        // Predicated region
        $region45: #{hyperconv_forward.2} parent=43 // pred_check
          %p312 = pneg %p57
        $region46: #{hyperconv_forward.2} parent=43 // pred_check_branch
          %314 = sbr.rel (%p312) target = $region48
        $region47: #{hyperconv_forward.2} parent=43 // pred_region
          %315 = dma.done [#allocation6], 128
        $region48: #{hyperconv_forward.2} parent=43 // pred_fallthru
          _
        %s316 = sand.u32 %s24, 1
        %s317 = scalar_lea.sflag [#allocation9], %s316
        %s318 = sand.u32 %s74, 1
        %s319 = smul.addr %s318, 64
        %s320 = scalar_lea.vmem [#allocation8], %s319
        // Predicated region
        $region49: #{hyperconv_forward.2} parent=43 // pred_check
          %p321 = pneg %p87
        $region50: #{hyperconv_forward.2} parent=43 // pred_check_branch
          %323 = sbr.rel (%p321) target = $region52
        $region51: #{hyperconv_forward.2} parent=43 // pred_region
          %324 = dma.done %s317, 1024
        $region52: #{hyperconv_forward.2} parent=43 // pred_fallthru
          _
        // Predicated region
        $region53: #{hyperconv_forward.2} parent=43 // pred_check
          %p325 = pneg %p108
        $region54: #{hyperconv_forward.2} parent=43 // pred_check_branch
          %327 = sbr.rel (%p325) target = $region56
        $region55: #{hyperconv_forward.2} parent=43 // pred_region
          %328 = dma.done [#allocation9], 128
        $region56: #{hyperconv_forward.2} parent=43 // pred_fallthru
          _
        // Predicated region
        $region57: #{hyperconv_forward.2} parent=43 // pred_check
          %p329 = pneg %p129
        $region58: #{hyperconv_forward.2} parent=43 // pred_check_branch
          %331 = sbr.rel (%p329) target = $region60
        $region59: #{hyperconv_forward.2} parent=43 // pred_region
          %332 = dma.done [#allocation12], 16
        $region60: #{hyperconv_forward.2} parent=43 // pred_fallthru
          _
        // Predicated region
        $region61: #{hyperconv_forward.2} parent=43 // pred_check
          %p333 = pneg %p155
        $region62: #{hyperconv_forward.2} parent=43 // pred_check_branch
          %335 = sbr.rel (%p333) target = $region64
        $region63: #{hyperconv_forward.2} parent=43 // pred_region
          %336 = dma.done [#allocation12], 2048
        $region64: #{hyperconv_forward.2} parent=43 // pred_fallthru
          _
        // Predicated region
        $region65: #{hyperconv_forward.2} parent=43 // pred_check
          %p337 = pneg %p176
        $region66: #{hyperconv_forward.2} parent=43 // pred_check_branch
          %339 = sbr.rel (%p337) target = $region68
        $region67: #{hyperconv_forward.2} parent=43 // pred_region
          %340 = dma.done [#allocation15], 512
        $region68: #{hyperconv_forward.2} parent=43 // pred_fallthru
          _
        %p341 = pneg %p57
        %p342 = pneg %p54
        %s343 = sand.u32 %s24, 1
        %s344 = scalar_lea.sflag [#allocation9], %s343
        %s345 = sand.u32 %s74, 1
        %s346 = smul.addr %s345, 64
        %s347 = scalar_lea.vmem [#allocation8], %s346
        %p348 = pneg %p87
        %p349 = pneg %p84
        %p350 = pneg %p108
        %p351 = pneg %p105
        %p352 = pneg %p129
        %p353 = pneg %p126
        %p354 = pneg %p155
        %p355 = pneg %p152
        %p356 = pneg %p176
        %p357 = pneg %p173
        %p358 = pneg %p197
        %p359 = pneg %p194
        %p360 = scmp.eq.s32.totalorder %s28, 0
        %s361 = scalar_select %p360, %s29, 0
        %s362 = smul.u32 16, %s361
        %s363 = smul.u32 16, %s29
        %p365 = scmp.eq.s32.totalorder %s28, 0
        %p366 = scmp.eq.s32.totalorder %s29, 0
        %p367 = pnand %p365, %p366
        %p368 = pneg %p367
        // Predicated region
        $region69: #{hyperconv_forward.2} parent=43 // pred_check
          _
        $region70: #{hyperconv_forward.2} parent=43 // pred_check_branch
          %370 = sbr.rel (%p367) target = $region72
        $region71: #{hyperconv_forward.2} parent=43 // pred_region
          %vm371 = vcmask 130048
          %372 = vst.msk [vmem:[#allocation2] sm:$0xff] %vm371, 0.0
          %373 = vst.msk [vmem:[#allocation2 + $0x8] sm:$0xff] %vm371, 0.0
          %374 = vst.msk [vmem:[#allocation2 + $0x10] sm:$0xff] %vm371, 0.0
          %375 = vst.msk [vmem:[#allocation2 + $0x18] sm:$0xff] %vm371, 0.0
          %vm376 = vcmask 261120
          %377 = vst.msk [vmem:[#allocation3] sm:$0xff] %vm376, 0.0
          %378 = vst.msk [vmem:[#allocation3 + $0x8] sm:$0xff] %vm376, 0.0
          %379 = vst.msk [vmem:[#allocation3 + $0x10] sm:$0xff] %vm376, 0.0
          %380 = vst.msk [vmem:[#allocation3 + $0x18] sm:$0xff] %vm376, 0.0
          %vm381 = vcmask 257024
          %382 = vst.msk [vmem:[#allocation16] sm:$0xf] %vm381, 0
          %383 = vst.msk [vmem:[#allocation16 + $0x4] sm:$0xf] %vm381, 0
          %384 = vst.msk [vmem:[#allocation16 + $0x8] sm:$0xf] %vm381, 0
          %385 = vst.msk [vmem:[#allocation16 + $0xc] sm:$0xf] %vm381, 0
        $region72: #{hyperconv_forward.2} parent=43 // pred_fallthru
          _
        // Predicated region
        $region73: #{hyperconv_forward.2} parent=43 // pred_check
          %p386 = pneg %p365
        $region74: #{hyperconv_forward.2} parent=43 // pred_check_branch
          %388 = sbr.rel (%p386) target = $region76
        $region75: #{hyperconv_forward.2} parent=43 // pred_region
          %v389 = vld [vmem:[#allocation5] sm:$0xff]
          %v390 = vunpack.c.l.s8.bf16 %v389
          %v391 = vunpack.c.h.s8.bf16 %v389
          %v392 = vld [vmem:[#allocation2] sm:$0xff]
          %v393 = vld [vmem:[#allocation2 + $0x8] sm:$0xff]
          %v394 = vld [vmem:[#allocation2 + $0x10] sm:$0xff]
          %v395 = vld [vmem:[#allocation2 + $0x18] sm:$0xff]
          %v396 = vld [vmem:[%s320] sm:$0xf]
          %v397 = vld [vmem:[%s320 + $0x4] sm:$0xf]
          %v398 = vld [vmem:[%s320 + $0x8] sm:$0xf]
          %v399 = vld [vmem:[%s320 + $0xc] sm:$0xf]
          %v400 = vld [vmem:[%s320 + $0x10] sm:$0xf]
          %v401 = vld [vmem:[%s320 + $0x14] sm:$0xf]
          %v402 = vld [vmem:[%s320 + $0x18] sm:$0xf]
          %v403 = vld [vmem:[%s320 + $0x1c] sm:$0xf]
          %v404 = vld [vmem:[%s320 + $0x20] sm:$0xf]
          %v405 = vld [vmem:[%s320 + $0x24] sm:$0xf]
          %v406 = vld [vmem:[%s320 + $0x28] sm:$0xf]
          %v407 = vld [vmem:[%s320 + $0x2c] sm:$0xf]
          %v408 = vld [vmem:[%s320 + $0x30] sm:$0xf]
          %v409 = vld [vmem:[%s320 + $0x34] sm:$0xf]
          %v410 = vld [vmem:[%s320 + $0x38] sm:$0xf]
          %v411 = vld [vmem:[%s320 + $0x3c] sm:$0xf]
          %v428 = vunpack.c.l.b16 %v396
          %v429 = vunpack.c.l.b16 %v397
          %v430 = vunpack.c.l.b16 %v398
          %v431 = vunpack.c.l.b16 %v399
          %v432 = vunpack.c.l.b16 %v400
          %v433 = vunpack.c.l.b16 %v401
          %v434 = vunpack.c.l.b16 %v402
          %v435 = vunpack.c.l.b16 %v403
          %v436 = vunpack.c.l.b16 %v404
          %v437 = vunpack.c.l.b16 %v405
          %v438 = vunpack.c.l.b16 %v406
          %v439 = vunpack.c.l.b16 %v407
          %v440 = vunpack.c.l.b16 %v408
          %v441 = vunpack.c.l.b16 %v409
          %v442 = vunpack.c.l.b16 %v410
          %v443 = vunpack.c.l.b16 %v411
          %v444 = vpack.c.b16 %v429, %v428
          %v445 = vpack.c.b16 %v431, %v430
          %v446 = vpack.c.b16 %v433, %v432
          %v447 = vpack.c.b16 %v435, %v434
          %v448 = vpack.c.b16 %v437, %v436
          %v449 = vpack.c.b16 %v439, %v438
          %v450 = vpack.c.b16 %v441, %v440
          %v451 = vpack.c.b16 %v443, %v442
          %460 = vmatprep.subr.bf16.mxu0 0
          %461 = vmatpush1.bf16.msra.mxu0 %v444
          %462 = vmatprep.subr.bf16.mxu0 0
          %463 = vmatpush1.bf16.msra.mxu0 %v445
          %464 = vmatprep.subr.bf16.mxu0 0
          %465 = vmatpush1.bf16.msra.mxu0 %v446
          %466 = vmatprep.subr.bf16.mxu0 0
          %467 = vmatpush1.bf16.msra.mxu0 %v447
          %468 = vmatprep.subr.bf16.mxu0 0
          %469 = vmatpush1.bf16.msra.mxu0 %v448
          %470 = vmatprep.subr.bf16.mxu0 0
          %471 = vmatpush1.bf16.msra.mxu0 %v449
          %472 = vmatprep.subr.bf16.mxu0 0
          %473 = vmatpush1.bf16.msra.mxu0 %v450
          %474 = vmatprep.subr.bf16.mxu0 0
          %475 = vmatpush1.bf16.msra.mxu0 %v451
          %476 = vmatprep.subr.bf16.mxu0 0
          %477 = vmatpush1.bf16.msra.mxu0 0
          %478 = vmatprep.subr.bf16.mxu0 0
          %479 = vmatpush1.bf16.msra.mxu0 0
          %480 = vmatprep.subr.bf16.mxu0 0
          %481 = vmatpush1.bf16.msra.mxu0 0
          %482 = vmatprep.subr.bf16.mxu0 0
          %483 = vmatpush1.bf16.msra.mxu0 0
          %484 = vmatprep.subr.bf16.mxu0 0
          %485 = vmatpush1.bf16.msra.mxu0 0
          %486 = vmatprep.subr.bf16.mxu0 0
          %487 = vmatpush1.bf16.msra.mxu0 0
          %488 = vmatprep.subr.bf16.mxu0 0
          %489 = vmatpush1.bf16.msra.mxu0 0
          %490 = vmatprep.subr.bf16.mxu0 0
          %491 = vmatpush1.bf16.msra.mxu0 0
          %492 = vmatprep.mubr.bf16.mxu0 0
          %493 = vmatmul.mubr.bf16.gmra.mrb[0].mxu0 %v390
          %v494 = vpop.f32.mrb[0].mxu0
          %v495 = vadd.f32 0.0, %v494
          %v496 = vpop.f32.mrb[0].mxu0
          %v497 = vpop.f32.mrb[0].mxu0
          %v498 = vadd.f32 0.0, %v497
          %v499 = vpop.f32.mrb[0].mxu0
          %500 = vmatprep.mubr.bf16.mxu0 0
          %501 = vmatmul.mubr.bf16.gmra.mrb[0].mxu0 %v391
          %v502 = vpop.f32.mrb[0].mxu0
          %v503 = vadd.f32 0.0, %v502
          %v504 = vpop.f32.mrb[0].mxu0
          %v505 = vpop.f32.mrb[0].mxu0
          %v506 = vadd.f32 0.0, %v505
          %v507 = vpop.f32.mrb[0].mxu0
          %508 = vdwg.mxu0
          %v509 = vadd.f32 %v392, %v495
          %v510 = vadd.f32 %v393, %v498
          %v511 = vadd.f32 %v394, %v503
          %v512 = vadd.f32 %v395, %v506
          %vm513 = vcmask 130048
          %514 = vst.msk [vmem:[#allocation2] sm:$0xff] %vm513, %v509
          %515 = vst.msk [vmem:[#allocation2 + $0x8] sm:$0xff] %vm513, %v510
          %516 = vst.msk [vmem:[#allocation2 + $0x10] sm:$0xff] %vm513, %v511
          %517 = vst.msk [vmem:[#allocation2 + $0x18] sm:$0xff] %vm513, %v512
        $region76: #{hyperconv_forward.2} parent=43 // pred_fallthru
          _
        %p518 = scmp.eq.s32.totalorder %s28, 1
        %p519 = pnand %p518, %p366
        %p520 = pneg %p519
        // Predicated region
        $region77: #{hyperconv_forward.2} parent=43 // pred_check
          _
        $region78: #{hyperconv_forward.2} parent=43 // pred_check_branch
          %522 = sbr.rel (%p519) target = $region80
        $region79: #{hyperconv_forward.2} parent=43 // pred_region
          %v523 = vld [vmem:[#allocation2] sm:$0xff]
          %v524 = vld [vmem:[#allocation2 + $0x8] sm:$0xff]
          %v525 = vld [vmem:[#allocation2 + $0x10] sm:$0xff]
          %v526 = vld [vmem:[#allocation2 + $0x18] sm:$0xff]
          %v527 = vld [vmem:[#allocation14] sm:$0xff]
          %v528 = vld [vmem:[#allocation14 + $0x8] sm:$0xff]
          %v529 = vld [vmem:[#allocation14 + $0x10] sm:$0xff]
          %v530 = vld [vmem:[#allocation14 + $0x18] sm:$0xff]
          %532 = vset.pattern.permute.xlu0 0
          %533 = vperm.xlu0 %532, %v527
          %v534 = vpop.permute.xlu0 %533
          %537 = vset.pattern.permute.xlu0 0
          %538 = vperm.xlu0 %537, %v528
          %v539 = vpop.permute.xlu0 %538
          %542 = vset.pattern.permute.xlu0 0
          %543 = vperm.xlu0 %542, %v529
          %v544 = vpop.permute.xlu0 %543
          %547 = vset.pattern.permute.xlu0 0
          %548 = vperm.xlu0 %547, %v530
          %v549 = vpop.permute.xlu0 %548
          %v551 = vmul.f32 %v523, %v534
          %v552 = vmul.f32 %v524, %v539
          %v553 = vmul.f32 %v525, %v544
          %v554 = vmul.f32 %v526, %v549
          %v555 = vpack.c.bf16 %v552, %v551
          %v556 = vpack.c.bf16 %v554, %v553
          %vm557 = vcmask 130048
          %558 = vst.msk [vmem:[#allocation4] sm:$0xff] %vm557, %v555
          %559 = vst.msk [vmem:[#allocation4 + $0x8] sm:$0xff] %vm557, %v556
        $region80: #{hyperconv_forward.2} parent=43 // pred_fallthru
          _
        // Predicated region
        $region81: #{hyperconv_forward.2} parent=43 // pred_check
          %p560 = pneg %p518
        $region82: #{hyperconv_forward.2} parent=43 // pred_check_branch
          %562 = sbr.rel (%p560) target = $region84
        $region83: #{hyperconv_forward.2} parent=43 // pred_region
          %v563 = vld [vmem:[#allocation5] sm:$0xff]
          %v564 = vunpack.c.l.s8.bf16 %v563
          %v565 = vunpack.c.h.s8.bf16 %v563
          %v566 = vld [vmem:[#allocation4] sm:$0xff]
          %v567 = vld [vmem:[#allocation4 + $0x8] sm:$0xff]
          %568 = vxpose.xlu0.c.b16.start [1/8] %v564, 128
          %569 = vxpose.xlu0.c.b16.cont [2/8] %v565, 128
          %570 = vxpose.xlu0.c.b16.cont [3/8] 0, 128
          %571 = vxpose.xlu0.c.b16.cont [4/8] 0, 128
          %572 = vxpose.xlu0.c.b16.cont [5/8] 0, 128
          %573 = vxpose.xlu0.c.b16.cont [6/8] 0, 128
          %574 = vxpose.xlu0.c.b16.cont [7/8] 0, 128
          %575 = vxpose.xlu0.c.b16.end [8/8] 0, 128
          %v576 = vpop.trf.xlu0
          %v577 = vpop.trf.xlu0
          %v578 = vpop.trf.xlu0
          %v579 = vpop.trf.xlu0
          %v580 = vpop.trf.xlu0
          %v581 = vpop.trf.xlu0
          %v582 = vpop.trf.xlu0
          %v583 = vpop.trf.xlu0
          %vm584 = vcmask 261120
          %v586 = vsel %vm584, %v576, 0
          %v589 = vsel %vm584, %v577, 0
          %v592 = vsel %vm584, %v578, 0
          %v595 = vsel %vm584, %v579, 0
          %v598 = vsel %vm584, %v580, 0
          %v601 = vsel %vm584, %v581, 0
          %v604 = vsel %vm584, %v582, 0
          %v607 = vsel %vm584, %v583, 0
          %609 = vmatprep.subr.bf16.mxu0 0
          %610 = vmatpush1.bf16.msra.mxu0 %v566
          %611 = vmatprep.subr.bf16.mxu0 0
          %612 = vmatpush1.bf16.msra.mxu0 %v567
          %613 = vmatprep.subr.bf16.mxu0 0
          %614 = vmatpush1.bf16.msra.mxu0 0
          %615 = vmatprep.subr.bf16.mxu0 0
          %616 = vmatpush1.bf16.msra.mxu0 0
          %617 = vmatprep.subr.bf16.mxu0 0
          %618 = vmatpush1.bf16.msra.mxu0 0
          %619 = vmatprep.subr.bf16.mxu0 0
          %620 = vmatpush1.bf16.msra.mxu0 0
          %621 = vmatprep.subr.bf16.mxu0 0
          %622 = vmatpush1.bf16.msra.mxu0 0
          %623 = vmatprep.subr.bf16.mxu0 0
          %624 = vmatpush1.bf16.msra.mxu0 0
          %625 = vmatprep.subr.bf16.mxu0 0
          %626 = vmatpush1.bf16.msra.mxu0 0
          %627 = vmatprep.subr.bf16.mxu0 0
          %628 = vmatpush1.bf16.msra.mxu0 0
          %629 = vmatprep.subr.bf16.mxu0 0
          %630 = vmatpush1.bf16.msra.mxu0 0
          %631 = vmatprep.subr.bf16.mxu0 0
          %632 = vmatpush1.bf16.msra.mxu0 0
          %633 = vmatprep.subr.bf16.mxu0 0
          %634 = vmatpush1.bf16.msra.mxu0 0
          %635 = vmatprep.subr.bf16.mxu0 0
          %636 = vmatpush1.bf16.msra.mxu0 0
          %637 = vmatprep.subr.bf16.mxu0 0
          %638 = vmatpush1.bf16.msra.mxu0 0
          %639 = vmatprep.subr.bf16.mxu0 0
          %640 = vmatpush1.bf16.msra.mxu0 0
          %641 = vmatprep.mubr.bf16.mxu0 0
          %642 = vmatmul.mubr.bf16.gmra.mrb[0].mxu0 %v586
          %v643 = vpop.f32.mrb[0].mxu0
          %v644 = vadd.f32 0.0, %v643
          %v645 = vpop.f32.mrb[0].mxu0
          %v646 = vpop.f32.mrb[0].mxu0
          %v647 = vadd.f32 0.0, %v646
          %v648 = vpop.f32.mrb[0].mxu0
          %649 = vmatprep.mubr.bf16.mxu0 0
          %650 = vmatmul.mubr.bf16.gmra.mrb[0].mxu0 %v589
          %v651 = vpop.f32.mrb[0].mxu0
          %v652 = vadd.f32 0.0, %v651
          %v653 = vpop.f32.mrb[0].mxu0
          %v654 = vpop.f32.mrb[0].mxu0
          %v655 = vadd.f32 0.0, %v654
          %v656 = vpop.f32.mrb[0].mxu0
          %657 = vmatprep.mubr.bf16.mxu0 0
          %658 = vmatmul.mubr.bf16.gmra.mrb[0].mxu0 %v592
          %v659 = vpop.f32.mrb[0].mxu0
          %v660 = vadd.f32 0.0, %v659
          %v661 = vpop.f32.mrb[0].mxu0
          %v662 = vpop.f32.mrb[0].mxu0
          %v663 = vadd.f32 0.0, %v662
          %v664 = vpop.f32.mrb[0].mxu0
          %665 = vmatprep.mubr.bf16.mxu0 0
          %666 = vmatmul.mubr.bf16.gmra.mrb[0].mxu0 %v595
          %v667 = vpop.f32.mrb[0].mxu0
          %v668 = vadd.f32 0.0, %v667
          %v669 = vpop.f32.mrb[0].mxu0
          %v670 = vpop.f32.mrb[0].mxu0
          %v671 = vadd.f32 0.0, %v670
          %v672 = vpop.f32.mrb[0].mxu0
          %673 = vmatprep.mubr.bf16.mxu0 0
          %674 = vmatmul.mubr.bf16.gmra.mrb[0].mxu0 %v598
          %v675 = vpop.f32.mrb[0].mxu0
          %v676 = vadd.f32 0.0, %v675
          %v677 = vpop.f32.mrb[0].mxu0
          %v678 = vpop.f32.mrb[0].mxu0
          %v679 = vadd.f32 0.0, %v678
          %v680 = vpop.f32.mrb[0].mxu0
          %681 = vmatprep.mubr.bf16.mxu0 0
          %682 = vmatmul.mubr.bf16.gmra.mrb[0].mxu0 %v601
          %v683 = vpop.f32.mrb[0].mxu0
          %v684 = vadd.f32 0.0, %v683
          %v685 = vpop.f32.mrb[0].mxu0
          %v686 = vpop.f32.mrb[0].mxu0
          %v687 = vadd.f32 0.0, %v686
          %v688 = vpop.f32.mrb[0].mxu0
          %689 = vmatprep.mubr.bf16.mxu0 0
          %690 = vmatmul.mubr.bf16.gmra.mrb[0].mxu0 %v604
          %v691 = vpop.f32.mrb[0].mxu0
          %v692 = vadd.f32 0.0, %v691
          %v693 = vpop.f32.mrb[0].mxu0
          %v694 = vpop.f32.mrb[0].mxu0
          %v695 = vadd.f32 0.0, %v694
          %v696 = vpop.f32.mrb[0].mxu0
          %697 = vmatprep.mubr.bf16.mxu0 0
          %698 = vmatmul.mubr.bf16.gmra.mrb[0].mxu0 %v607
          %v699 = vpop.f32.mrb[0].mxu0
          %v700 = vadd.f32 0.0, %v699
          %v701 = vpop.f32.mrb[0].mxu0
          %v702 = vpop.f32.mrb[0].mxu0
          %v703 = vadd.f32 0.0, %v702
          %v704 = vpop.f32.mrb[0].mxu0
          %705 = vdwg.mxu0
          %v706 = vld [vmem:[#allocation13] sm:$0xff]
          %v707 = vld [vmem:[#allocation13 + $0x8] sm:$0xff]
          %v708 = vld [vmem:[#allocation13 + $0x10] sm:$0xff]
          %v709 = vld [vmem:[#allocation13 + $0x18] sm:$0xff]
          %v710 = vld [vmem:[#allocation13 + $0x20] sm:$0xff]
          %v711 = vld [vmem:[#allocation13 + $0x28] sm:$0xff]
          %v712 = vld [vmem:[#allocation13 + $0x30] sm:$0xff]
          %v713 = vld [vmem:[#allocation13 + $0x38] sm:$0xff]
          %v714 = vld [vmem:[#allocation13 + $0x40] sm:$0xff]
          %v715 = vld [vmem:[#allocation13 + $0x48] sm:$0xff]
          %v716 = vld [vmem:[#allocation13 + $0x50] sm:$0xff]
          %v717 = vld [vmem:[#allocation13 + $0x58] sm:$0xff]
          %v718 = vld [vmem:[#allocation13 + $0x60] sm:$0xff]
          %v719 = vld [vmem:[#allocation13 + $0x68] sm:$0xff]
          %v720 = vld [vmem:[#allocation13 + $0x70] sm:$0xff]
          %v721 = vld [vmem:[#allocation13 + $0x78] sm:$0xff]
          %723 = vset.pattern.permute.xlu0 0
          %724 = vperm.xlu0 %723, %v706
          %v725 = vpop.permute.xlu0 %724
          %728 = vset.pattern.permute.xlu0 0
          %729 = vperm.xlu0 %728, %v707
          %v730 = vpop.permute.xlu0 %729
          %733 = vset.pattern.permute.xlu0 0
          %734 = vperm.xlu0 %733, %v708
          %v735 = vpop.permute.xlu0 %734
          %738 = vset.pattern.permute.xlu0 0
          %739 = vperm.xlu0 %738, %v709
          %v740 = vpop.permute.xlu0 %739
          %743 = vset.pattern.permute.xlu0 0
          %744 = vperm.xlu0 %743, %v710
          %v745 = vpop.permute.xlu0 %744
          %748 = vset.pattern.permute.xlu0 0
          %749 = vperm.xlu0 %748, %v711
          %v750 = vpop.permute.xlu0 %749
          %753 = vset.pattern.permute.xlu0 0
          %754 = vperm.xlu0 %753, %v712
          %v755 = vpop.permute.xlu0 %754
          %758 = vset.pattern.permute.xlu0 0
          %759 = vperm.xlu0 %758, %v713
          %v760 = vpop.permute.xlu0 %759
          %763 = vset.pattern.permute.xlu0 0
          %764 = vperm.xlu0 %763, %v714
          %v765 = vpop.permute.xlu0 %764
          %768 = vset.pattern.permute.xlu0 0
          %769 = vperm.xlu0 %768, %v715
          %v770 = vpop.permute.xlu0 %769
          %773 = vset.pattern.permute.xlu0 0
          %774 = vperm.xlu0 %773, %v716
          %v775 = vpop.permute.xlu0 %774
          %778 = vset.pattern.permute.xlu0 0
          %779 = vperm.xlu0 %778, %v717
          %v780 = vpop.permute.xlu0 %779
          %783 = vset.pattern.permute.xlu0 0
          %784 = vperm.xlu0 %783, %v718
          %v785 = vpop.permute.xlu0 %784
          %788 = vset.pattern.permute.xlu0 0
          %789 = vperm.xlu0 %788, %v719
          %v790 = vpop.permute.xlu0 %789
          %793 = vset.pattern.permute.xlu0 0
          %794 = vperm.xlu0 %793, %v720
          %v795 = vpop.permute.xlu0 %794
          %798 = vset.pattern.permute.xlu0 0
          %799 = vperm.xlu0 %798, %v721
          %v800 = vpop.permute.xlu0 %799
          %v802 = vmul.f32 %v644, %v725
          %v803 = vmul.f32 %v647, %v730
          %v804 = vmul.f32 %v652, %v735
          %v805 = vmul.f32 %v655, %v740
          %v806 = vmul.f32 %v660, %v745
          %v807 = vmul.f32 %v663, %v750
          %v808 = vmul.f32 %v668, %v755
          %v809 = vmul.f32 %v671, %v760
          %v810 = vmul.f32 %v676, %v765
          %v811 = vmul.f32 %v679, %v770
          %v812 = vmul.f32 %v684, %v775
          %v813 = vmul.f32 %v687, %v780
          %v814 = vmul.f32 %v692, %v785
          %v815 = vmul.f32 %v695, %v790
          %v816 = vmul.f32 %v700, %v795
          %v817 = vmul.f32 %v703, %v800
          %v818 = vpack.c.bf16 %v803, %v802
          %v819 = vpack.c.bf16 %v805, %v804
          %v820 = vpack.c.bf16 %v807, %v806
          %v821 = vpack.c.bf16 %v809, %v808
          %v822 = vpack.c.bf16 %v811, %v810
          %v823 = vpack.c.bf16 %v813, %v812
          %v824 = vpack.c.bf16 %v815, %v814
          %v825 = vpack.c.bf16 %v817, %v816
          %v826 = vld [vmem:[#allocation10] sm:$0xf]
          %v827 = vld [vmem:[#allocation10 + $0x4] sm:$0xf]
          %v828 = vld [vmem:[#allocation11] sm:$0x1]
          %v830 = vlaneseq
          %v831 = vshrl.u32 %v830, 7
          %v832 = vsub.s32 0, %v831
          %v833 = vrot.slane %v828, %v832
          %v837 = vunpack.c.l.b16 %v826
          %v838 = vunpack.c.l.b16 %v827
          %v839 = vpack.c.b16 %v838, %v837
          %vm841 = vcmask 130048
          %v843 = vsel %vm841, %v818, 0
          %v846 = vsel %vm841, %v819, 0
          %v849 = vsel %vm841, %v820, 0
          %v852 = vsel %vm841, %v821, 0
          %v855 = vsel %vm841, %v822, 0
          %v858 = vsel %vm841, %v823, 0
          %v861 = vsel %vm841, %v824, 0
          %v864 = vsel %vm841, %v825, 0
          %866 = vmatprep.subr.bf16.mxu0 0
          %867 = vmatpush1.bf16.msra.mxu0 %v839
          %868 = vmatprep.subr.bf16.mxu0 0
          %869 = vmatpush1.bf16.msra.mxu0 0
          %870 = vmatprep.subr.bf16.mxu0 0
          %871 = vmatpush1.bf16.msra.mxu0 0
          %872 = vmatprep.subr.bf16.mxu0 0
          %873 = vmatpush1.bf16.msra.mxu0 0
          %874 = vmatprep.subr.bf16.mxu0 0
          %875 = vmatpush1.bf16.msra.mxu0 0
          %876 = vmatprep.subr.bf16.mxu0 0
          %877 = vmatpush1.bf16.msra.mxu0 0
          %878 = vmatprep.subr.bf16.mxu0 0
          %879 = vmatpush1.bf16.msra.mxu0 0
          %880 = vmatprep.subr.bf16.mxu0 0
          %881 = vmatpush1.bf16.msra.mxu0 0
          %882 = vmatprep.subr.bf16.mxu0 0
          %883 = vmatpush1.bf16.msra.mxu0 0
          %884 = vmatprep.subr.bf16.mxu0 0
          %885 = vmatpush1.bf16.msra.mxu0 0
          %886 = vmatprep.subr.bf16.mxu0 0
          %887 = vmatpush1.bf16.msra.mxu0 0
          %888 = vmatprep.subr.bf16.mxu0 0
          %889 = vmatpush1.bf16.msra.mxu0 0
          %890 = vmatprep.subr.bf16.mxu0 0
          %891 = vmatpush1.bf16.msra.mxu0 0
          %892 = vmatprep.subr.bf16.mxu0 0
          %893 = vmatpush1.bf16.msra.mxu0 0
          %894 = vmatprep.subr.bf16.mxu0 0
          %895 = vmatpush1.bf16.msra.mxu0 0
          %896 = vmatprep.subr.bf16.mxu0 0
          %897 = vmatpush1.bf16.msra.mxu0 0
          %898 = vmatprep.mubr.bf16.mxu0 0
          %899 = vmatmul.mubr.bf16.gmra.mrb[0].mxu0 %v843
          %v900 = vpop.f32.mrb[0].mxu0
          %v901 = vadd.f32 %v833, %v900
          %v902 = vpop.f32.mrb[0].mxu0
          %v903 = vpop.f32.mrb[0].mxu0
          %v904 = vadd.f32 %v833, %v903
          %v905 = vpop.f32.mrb[0].mxu0
          %906 = vmatprep.mubr.bf16.mxu0 0
          %907 = vmatmul.mubr.bf16.gmra.mrb[0].mxu0 %v846
          %v908 = vpop.f32.mrb[0].mxu0
          %v909 = vadd.f32 %v833, %v908
          %v910 = vpop.f32.mrb[0].mxu0
          %v911 = vpop.f32.mrb[0].mxu0
          %v912 = vadd.f32 %v833, %v911
          %v913 = vpop.f32.mrb[0].mxu0
          %914 = vmatprep.mubr.bf16.mxu0 0
          %915 = vmatmul.mubr.bf16.gmra.mrb[0].mxu0 %v849
          %v916 = vpop.f32.mrb[0].mxu0
          %v917 = vadd.f32 %v833, %v916
          %v918 = vpop.f32.mrb[0].mxu0
          %v919 = vpop.f32.mrb[0].mxu0
          %v920 = vadd.f32 %v833, %v919
          %v921 = vpop.f32.mrb[0].mxu0
          %922 = vmatprep.mubr.bf16.mxu0 0
          %923 = vmatmul.mubr.bf16.gmra.mrb[0].mxu0 %v852
          %v924 = vpop.f32.mrb[0].mxu0
          %v925 = vadd.f32 %v833, %v924
          %v926 = vpop.f32.mrb[0].mxu0
          %v927 = vpop.f32.mrb[0].mxu0
          %v928 = vadd.f32 %v833, %v927
          %v929 = vpop.f32.mrb[0].mxu0
          %930 = vmatprep.mubr.bf16.mxu0 0
          %931 = vmatmul.mubr.bf16.gmra.mrb[0].mxu0 %v855
          %v932 = vpop.f32.mrb[0].mxu0
          %v933 = vadd.f32 %v833, %v932
          %v934 = vpop.f32.mrb[0].mxu0
          %v935 = vpop.f32.mrb[0].mxu0
          %v936 = vadd.f32 %v833, %v935
          %v937 = vpop.f32.mrb[0].mxu0
          %938 = vmatprep.mubr.bf16.mxu0 0
          %939 = vmatmul.mubr.bf16.gmra.mrb[0].mxu0 %v858
          %v940 = vpop.f32.mrb[0].mxu0
          %v941 = vadd.f32 %v833, %v940
          %v942 = vpop.f32.mrb[0].mxu0
          %v943 = vpop.f32.mrb[0].mxu0
          %v944 = vadd.f32 %v833, %v943
          %v945 = vpop.f32.mrb[0].mxu0
          %946 = vmatprep.mubr.bf16.mxu0 0
          %947 = vmatmul.mubr.bf16.gmra.mrb[0].mxu0 %v861
          %v948 = vpop.f32.mrb[0].mxu0
          %v949 = vadd.f32 %v833, %v948
          %v950 = vpop.f32.mrb[0].mxu0
          %v951 = vpop.f32.mrb[0].mxu0
          %v952 = vadd.f32 %v833, %v951
          %v953 = vpop.f32.mrb[0].mxu0
          %954 = vmatprep.mubr.bf16.mxu0 0
          %955 = vmatmul.mubr.bf16.gmra.mrb[0].mxu0 %v864
          %v956 = vpop.f32.mrb[0].mxu0
          %v957 = vadd.f32 %v833, %v956
          %v958 = vpop.f32.mrb[0].mxu0
          %v959 = vpop.f32.mrb[0].mxu0
          %v960 = vadd.f32 %v833, %v959
          %v961 = vpop.f32.mrb[0].mxu0
          %962 = vdwg.mxu0
          %v963 = vmax.f32 %v901, 0.0
          %v964 = vmax.f32 %v904, 0.0
          %v965 = vmax.f32 %v909, 0.0
          %v966 = vmax.f32 %v912, 0.0
          %v967 = vmax.f32 %v917, 0.0
          %v968 = vmax.f32 %v920, 0.0
          %v969 = vmax.f32 %v925, 0.0
          %v970 = vmax.f32 %v928, 0.0
          %v971 = vmax.f32 %v933, 0.0
          %v972 = vmax.f32 %v936, 0.0
          %v973 = vmax.f32 %v941, 0.0
          %v974 = vmax.f32 %v944, 0.0
          %v975 = vmax.f32 %v949, 0.0
          %v976 = vmax.f32 %v952, 0.0
          %v977 = vmax.f32 %v957, 0.0
          %v978 = vmax.f32 %v960, 0.0
          %v979 = vld [vmem:[#allocation3] sm:$0xff]
          %v980 = vld [vmem:[#allocation3 + $0x8] sm:$0xff]
          %v981 = vld [vmem:[#allocation3 + $0x10] sm:$0xff]
          %v982 = vld [vmem:[#allocation3 + $0x18] sm:$0xff]
          %v983 = vpack.c.bf16 %v964, %v963
          %v984 = vpack.c.bf16 %v966, %v965
          %v985 = vpack.c.bf16 %v968, %v967
          %v986 = vpack.c.bf16 %v970, %v969
          %v987 = vpack.c.bf16 %v972, %v971
          %v988 = vpack.c.bf16 %v974, %v973
          %v989 = vpack.c.bf16 %v976, %v975
          %v990 = vpack.c.bf16 %v978, %v977
          %991 = vmatprep.subr.bf16.mxu0 0
          %992 = vmatpush1.bf16.msra.mxu0 %v983
          %993 = vmatprep.subr.bf16.mxu0 0
          %994 = vmatpush1.bf16.msra.mxu0 %v984
          %995 = vmatprep.subr.bf16.mxu0 0
          %996 = vmatpush1.bf16.msra.mxu0 %v985
          %997 = vmatprep.subr.bf16.mxu0 0
          %998 = vmatpush1.bf16.msra.mxu0 %v986
          %999 = vmatprep.subr.bf16.mxu0 0
          %1000 = vmatpush1.bf16.msra.mxu0 %v987
          %1001 = vmatprep.subr.bf16.mxu0 0
          %1002 = vmatpush1.bf16.msra.mxu0 %v988
          %1003 = vmatprep.subr.bf16.mxu0 0
          %1004 = vmatpush1.bf16.msra.mxu0 %v989
          %1005 = vmatprep.subr.bf16.mxu0 0
          %1006 = vmatpush1.bf16.msra.mxu0 %v990
          %1007 = vmatprep.subr.bf16.mxu0 0
          %1008 = vmatpush1.bf16.msra.mxu0 0
          %1009 = vmatprep.subr.bf16.mxu0 0
          %1010 = vmatpush1.bf16.msra.mxu0 0
          %1011 = vmatprep.subr.bf16.mxu0 0
          %1012 = vmatpush1.bf16.msra.mxu0 0
          %1013 = vmatprep.subr.bf16.mxu0 0
          %1014 = vmatpush1.bf16.msra.mxu0 0
          %1015 = vmatprep.subr.bf16.mxu0 0
          %1016 = vmatpush1.bf16.msra.mxu0 0
          %1017 = vmatprep.subr.bf16.mxu0 0
          %1018 = vmatpush1.bf16.msra.mxu0 0
          %1019 = vmatprep.subr.bf16.mxu0 0
          %1020 = vmatpush1.bf16.msra.mxu0 0
          %1021 = vmatprep.subr.bf16.mxu0 0
          %1022 = vmatpush1.bf16.msra.mxu0 0
          %1023 = vmatprep.mubr.bf16.mxu0 0
          %1024 = vmatmul.mubr.bf16.gmra.mrb[0].mxu0 %v564
          %v1025 = vpop.f32.mrb[0].mxu0
          %v1026 = vadd.f32 0.0, %v1025
          %v1027 = vpop.f32.mrb[0].mxu0
          %v1028 = vpop.f32.mrb[0].mxu0
          %v1029 = vadd.f32 0.0, %v1028
          %v1030 = vpop.f32.mrb[0].mxu0
          %1031 = vmatprep.mubr.bf16.mxu0 0
          %1032 = vmatmul.mubr.bf16.gmra.mrb[0].mxu0 %v565
          %v1033 = vpop.f32.mrb[0].mxu0
          %v1034 = vadd.f32 0.0, %v1033
          %v1035 = vpop.f32.mrb[0].mxu0
          %v1036 = vpop.f32.mrb[0].mxu0
          %v1037 = vadd.f32 0.0, %v1036
          %v1038 = vpop.f32.mrb[0].mxu0
          %1039 = vdwg.mxu0
          %v1040 = vadd.f32 %v979, %v1026
          %v1041 = vadd.f32 %v980, %v1029
          %v1042 = vadd.f32 %v981, %v1034
          %v1043 = vadd.f32 %v982, %v1037
          %1044 = vst.msk [vmem:[#allocation3] sm:$0xff] %vm584, %v1040
          %1045 = vst.msk [vmem:[#allocation3 + $0x8] sm:$0xff] %vm584, %v1041
          %1046 = vst.msk [vmem:[#allocation3 + $0x10] sm:$0xff] %vm584, %v1042
          %1047 = vst.msk [vmem:[#allocation3 + $0x18] sm:$0xff] %vm584, %v1043
        $region84: #{hyperconv_forward.2} parent=43 // pred_fallthru
          _
        // Predicated region
        $region85: #{hyperconv_forward.2} parent=43 // pred_check
          _
        $region86: #{hyperconv_forward.2} parent=43 // pred_check_branch
          %1049 = sbr.rel (%p519) target = $region88
        $region87: #{hyperconv_forward.2} parent=43 // pred_region
          %v1050 = vld [vmem:[#allocation3] sm:$0xff]
          %v1051 = vld [vmem:[#allocation3 + $0x8] sm:$0xff]
          %v1052 = vld [vmem:[#allocation3 + $0x10] sm:$0xff]
          %v1053 = vld [vmem:[#allocation3 + $0x18] sm:$0xff]
          %v1054 = vld [vmem:[#allocation14] sm:$0xff]
          %v1055 = vld [vmem:[#allocation14 + $0x8] sm:$0xff]
          %v1056 = vld [vmem:[#allocation14 + $0x10] sm:$0xff]
          %v1057 = vld [vmem:[#allocation14 + $0x18] sm:$0xff]
          %1059 = vset.pattern.permute.xlu0 0
          %1060 = vperm.xlu0 %1059, %v1054
          %v1061 = vpop.permute.xlu0 %1060
          %1064 = vset.pattern.permute.xlu0 0
          %1065 = vperm.xlu0 %1064, %v1055
          %v1066 = vpop.permute.xlu0 %1065
          %1069 = vset.pattern.permute.xlu0 0
          %1070 = vperm.xlu0 %1069, %v1056
          %v1071 = vpop.permute.xlu0 %1070
          %1074 = vset.pattern.permute.xlu0 0
          %1075 = vperm.xlu0 %1074, %v1057
          %v1076 = vpop.permute.xlu0 %1075
          %v1078 = vmul.f32 %v1050, %v1061
          %v1079 = vmul.f32 %v1051, %v1066
          %v1080 = vmul.f32 %v1052, %v1071
          %v1081 = vmul.f32 %v1053, %v1076
          %v1082 = vpack.c.bf16 %v1079, %v1078
          %v1083 = vpack.c.bf16 %v1081, %v1080
          %v1086 = vunpack.c.l.b16 %v1082
          %v1087 = vunpack.c.h.b16 %v1082
          %v1088 = vunpack.c.l.b16 %v1083
          %v1089 = vunpack.c.h.b16 %v1083
          %v1090 = vpack.c.b16 %v1086, %v1086
          %v1091 = vpack.c.b16 %v1087, %v1087
          %v1092 = vpack.c.b16 %v1088, %v1088
          %v1093 = vpack.c.b16 %v1089, %v1089
          %vm1098 = vcmask 257024
          %1099 = vst.msk [vmem:[#allocation16] sm:$0xf] %vm1098, %v1090
          %1100 = vst.msk [vmem:[#allocation16 + $0x4] sm:$0xf] %vm1098, %v1091
          %1101 = vst.msk [vmem:[#allocation16 + $0x8] sm:$0xf] %vm1098, %v1092
          %1102 = vst.msk [vmem:[#allocation16 + $0xc] sm:$0xf] %vm1098, %v1093
        $region88: #{hyperconv_forward.2} parent=43 // pred_fallthru
          _
        // Predicated region
        $region89: #{hyperconv_forward.2} parent=43 // pred_check
          %p1103 = pneg %p194
        $region90: #{hyperconv_forward.2} parent=43 // pred_check_branch
          %1105 = sbr.rel (%p1103) target = $region92
        $region91: #{hyperconv_forward.2} parent=43 // pred_region
          %s1107 = ssub.s32 256, 256
          %1108 = vsyncadd [#allocation7], %s1107
          %s1109 = sshll.u32 [#allocation16], 4
          %s1110 = int_to_ptr.vmem [resolvable:$true] %s1109
          %1115 = dma.vmem_to_hbm [thread:$0]  %s1110, 256, %s6, [#allocation7], 64, 64, 4
        $region92: #{hyperconv_forward.2} parent=43 // pred_fallthru
          _
        // Predicated region
        $region93: #{hyperconv_forward.2} parent=43 // pred_check
          %p1116 = pneg %p194
        $region94: #{hyperconv_forward.2} parent=43 // pred_check_branch
          %1118 = sbr.rel (%p1116) target = $region96
        $region95: #{hyperconv_forward.2} parent=43 // pred_region
          %1119 = dma.done [#allocation7], 256
        $region96: #{hyperconv_forward.2} parent=43 // pred_fallthru
          _
      $region44: #{hyperconv_forward.2} parent=5 // pred_fallthru
        _
      %p1120 = scmp.le.s32.totalorder 2, %s19
      // Predicated region
      $region97: #{hyperconv_forward.2} parent=5 // pred_check
        %p1121 = pneg %p1120
      $region98: #{hyperconv_forward.2} parent=5 // pred_check_branch
        %1123 = sbr.rel (%p1121) target = $region100
      $region99: #{hyperconv_forward.2} parent=5 // pred_region
        %s1124 = ssub.s32 %s19, 2
      $region100: #{hyperconv_forward.2} parent=5 // pred_fallthru
        _
    $region6: #{hyperconv_forward.2} parent=1 // loop_footer
      %s23 = sadd.s32 1, %s19
    $region7: #{hyperconv_forward.2} parent=1 // loop_footer_branch
      %18 = sbr.rel target = $region3
    $region8: #{hyperconv_forward.2} parent=1 // loop_exit
      _
    %1125 = vsyncpa [#allocation6], 1
    %s1126 = scalar_lea.sflag [#allocation6], 1
    %1127 = vsyncpa %s1126, 1
    %1128 = vsyncpa [#allocation9], 1
    %s1129 = scalar_lea.sflag [#allocation9], 1
    %1130 = vsyncpa %s1129, 1
    %1131 = vsyncpa [#allocation12], 1
    %1132 = vsyncpa [#allocation15], 1
    %1133 = vsyncpa [#allocation7], 1
    %s1134 = scalar_lea.sflag [#allocation7], 1
    %1135 = vsyncpa %s1134, 1

</llo_original>
